<compile_context>
chip_gen: v7x
topology: tpu7x:2x2x1
jax: 0.10.0
libtpu: 0.0.40
codegen_flags: <defaults>
</compile_context>

<pallas_src>
from math import pi
import functools

import jax
import jax.numpy as jnp
from jax.experimental import pallas as pl
from jax.experimental.pallas import tpu as pltpu


def _bessel_rbf_kernel(dist_ref, out_ref, *, cutoff_lower, freq_scale, num_rbf):
    # dist_ref : (tile_n, 1)       f32
    # out_ref  : (tile_n, num_rbf) f32
    #
    # freqs_i = i * pi / (U - L), i = 1..num_rbf -- generated on the VPU, no
    # input operand / extra double-buffered VMEM block needed.
    idx = jax.lax.broadcasted_iota(jnp.int32, (1, num_rbf), 1)
    freqs = (idx + 1).astype(jnp.float32) * freq_scale          # (1, num_rbf)

    inputs = dist_ref[...] - cutoff_lower                        # (tile_n, 1)
    # Hoist the division out of the wide path: one reciprocal per row
    # (num_rbf x fewer VALU divide ops), then a broadcast multiply.
    inv = jnp.where(inputs == 0.0, 1.0, 1.0 / inputs)            # (tile_n, 1)
    out_ref[...] = jnp.sin(inputs * freqs) * inv                 # (tile_n, num_rbf)


def _round_up(x, m):
    return ((x + m - 1) // m) * m


def bessel_rbf(dist, *, cutoff_lower=0.0, cutoff_upper=5.0, num_rbf=50,
               max_tile_n=1024):
    """Pallas implementation of BesselRBF.forward.

    dist: (N,) float32
    returns: (N, num_rbf) float32
    """
    dist = jnp.asarray(dist, jnp.float32)
    n = dist.shape[0]

    # Large tiles to amortize per-grid-step overhead, but keep >=2 grid steps
    # when possible so v7x can shard the (parallel) node axis across both TCs.
    tile_n = min(max_tile_n, max(8, _round_up(pl.cdiv(n, 2), 8)))
    n_pad = _round_up(n, tile_n)
    grid = n_pad // tile_n

    dist2d = jnp.pad(dist, (0, n_pad - n)).reshape(n_pad, 1)

    kernel = functools.partial(
        _bessel_rbf_kernel,
        cutoff_lower=float(cutoff_lower),                         # Python floats:
        freq_scale=float(pi) / float(cutoff_upper - cutoff_lower),  # compile-time consts
        num_rbf=int(num_rbf),
    )

    out = pl.pallas_call(
        kernel,
        out_shape=jax.ShapeDtypeStruct((n_pad, num_rbf), jnp.float32),
        grid_spec=pltpu.PrefetchScalarGridSpec(
            num_scalar_prefetch=0,
            grid=(grid,),
            in_specs=[
                pl.BlockSpec((tile_n, 1), lambda i: (i, 0)),      # dist tile
            ],
            out_specs=pl.BlockSpec((tile_n, num_rbf), lambda i: (i, 0)),
        ),
        compiler_params=pltpu.CompilerParams(
            dimension_semantics=("parallel",)),
    )(dist2d)

    return out[:n]


def _reference(dist, cutoff_lower=0.0, cutoff_upper=5.0, num_rbf=50):
    freqs = (jnp.arange(1, num_rbf + 1, dtype=jnp.float32)
             * jnp.float32(pi) / jnp.float32(cutoff_upper - cutoff_lower))
    inputs = dist - cutoff_lower
    ax = inputs[..., None] * freqs
    sinax = jnp.sin(ax)
    norm = jnp.where(inputs == 0.0, jnp.float32(1.0), inputs)
    return sinax / norm[..., None]


if __name__ == "__main__":
    key = jax.random.PRNGKey(0)
    num_nodes = 200           # deliberately NOT a multiple of the tile (tail padding path)
    num_rbf = 50
    cutoff_lower, cutoff_upper = 0.0, 5.0

    dist = jax.random.uniform(key, (num_nodes,), dtype=jnp.float32,
                              minval=0.0, maxval=cutoff_upper)
    # include an exact-zero distance to exercise the where() branch
    dist = dist.at[3].set(0.0)

    y = bessel_rbf(dist, cutoff_lower=cutoff_lower, cutoff_upper=cutoff_upper,
                   num_rbf=num_rbf)
    y = jax.block_until_ready(y)

    y_ref = _reference(dist, cutoff_lower, cutoff_upper, num_rbf)
    assert y.shape == (num_nodes, num_rbf)
    assert jnp.allclose(y, y_ref, atol=1e-5, rtol=1e-5)

    print("KERNEL_OK")
</pallas_src>

<mosaic_0001>
module attributes {stable_mosaic.version = 11 : i64} {
  func.func @_bessel_rbf_kernel(%arg0: i32, %arg1: memref<104x1xf32, #tpu.memory_space<vmem>>, %arg2: memref<104x50xf32, #tpu.memory_space<vmem>>) attributes {dimension_semantics = [#tpu.dimension_semantics<parallel>], iteration_bounds = array<i64: 2>, scalar_prefetch = 0 : i64, scratch_operands = 0 : i64, tpu.core_type = #tpu.core_type<tc>, window_params = [{transform_indices = @transform_0, window_bounds = array<i64: 104, 1>}, {transform_indices = @transform_1, window_bounds = array<i64: 104, 50>}]} {
    %0 = tpu.iota {dimensions = array<i32: 1>} : vector<1x50xi32>
    %c1_i32 = arith.constant 1 : i32
    %1 = vector.broadcast %c1_i32 : i32 to vector<1x50xi32>
    %2 = arith.addi %0, %1 : vector<1x50xi32>
    %3 = arith.sitofp %2 : vector<1x50xi32> to vector<1x50xf32>
    %cst = arith.constant 0.628318548 : f32
    %4 = vector.broadcast %cst : f32 to vector<1x50xf32>
    %5 = arith.mulf %3, %4 : vector<1x50xf32>
    %c0 = arith.constant 0 : index
    %c0_0 = arith.constant 0 : index
    %6 = vector.load %arg1[%c0, %c0_0] : memref<104x1xf32, #tpu.memory_space<vmem>>, vector<104x1xf32>
    %cst_1 = arith.constant 0.000000e+00 : f32
    %7 = vector.broadcast %cst_1 : f32 to vector<104x1xf32>
    %8 = arith.subf %6, %7 : vector<104x1xf32>
    %cst_2 = arith.constant 0.000000e+00 : f32
    %9 = vector.broadcast %cst_2 : f32 to vector<104x1xf32>
    %10 = arith.cmpf oeq, %8, %9 : vector<104x1xf32>
    %cst_3 = arith.constant 1.000000e+00 : f32
    %11 = vector.broadcast %cst_3 : f32 to vector<104x1xf32>
    %12 = arith.divf %11, %8 : vector<104x1xf32>
    %cst_4 = arith.constant 1.000000e+00 : f32
    %13 = vector.broadcast %cst_4 : f32 to vector<104x1xf32>
    %14 = arith.select %10, %13, %12 : vector<104x1xi1>, vector<104x1xf32>
    %15 = vector.broadcast %8 : vector<104x1xf32> to vector<104x50xf32>
    %16 = vector.broadcast %5 : vector<1x50xf32> to vector<104x50xf32>
    %17 = arith.mulf %15, %16 : vector<104x50xf32>
    %18 = math.sin %17 : vector<104x50xf32>
    %19 = vector.broadcast %14 : vector<104x1xf32> to vector<104x50xf32>
    %20 = arith.mulf %18, %19 : vector<104x50xf32>
    %c0_5 = arith.constant 0 : index
    %c0_6 = arith.constant 0 : index
    %21 = vector.load %arg2[%c0_5, %c0_6] : memref<104x50xf32, #tpu.memory_space<vmem>>, vector<104x50xf32>
    tpu.vector_store %arg2[%c0_5, %c0_6], %20 {strides = array<i32>} : memref<104x50xf32, #tpu.memory_space<vmem>>, vector<104x50xf32>,
    return
  }
  func.func @transform_0(%arg0: i32) -> (i32, i32) {
    %c0_i32 = arith.constant 0 : i32
    %c0_i32_0 = arith.constant 0 : i32
    return %arg0, %c0_i32 : i32, i32
  }
  func.func @transform_1(%arg0: i32) -> (i32, i32) {
    %c0_i32 = arith.constant 0 : i32
    %c0_i32_0 = arith.constant 0 : i32
    return %arg0, %c0_i32 : i32, i32
  }
}

</mosaic_0001>

<llo_original>
// kernel: tpu_custom_call.1
$region0: #{tpu_custom_call.1}
  #allocation0 [shape = 'u32[]', space=smem, size = 0x4, offset = 0x4, fixed_abs, tag = 'smem constant byte address 0x4 - core index']
  #allocation1 [shape = 'u32[144,128]{1,0:T(1,128)}', space=vmem, size = 0x12000, scoped, tag = 'internal scratch']
  %s0 = inlined_call_operand.vmem [shape: f32[208,1], index: 0, kind: input, shape index: {}]
  %s1 = inlined_call_operand.vmem [shape: f32[208,50], index: 1, kind: output, shape index: {}]
  %s2 = sld [smem:[#allocation0]]
  $region37: #{tpu_custom_call.1} parent=0
    _
  %s4 = ssub.s32 1, %s2
  %s5 = scalar_select 0, %s4, %s2
  loop: start=0, step=1, limit=4
  $region2: #{tpu_custom_call.1} parent=0 // loop_pre_header
    _
  $region3: #{tpu_custom_call.1} parent=0 // loop_header
    %s7 = sphi 0, %s11
    %p8 = scmp.ge.s32.totalorder %s7, 4
    %s17 = sphi 0, %s19
    %s20 = sphi 0, %s17
    %s21 = sphi 0, %s20
    %s37 = sphi 0, %s21
    %s43 = sphi 0, %s45
    %s46 = sphi 0, %s43
    %s47 = sphi 0, %s46
    %s63 = sphi 0, %s47
  $region4: #{tpu_custom_call.1} parent=0 // loop_header_branch
    %10 = sbr.rel (%p8) target = $region8
  $region5: #{tpu_custom_call.1} parent=0 // loop_body
    %s12 = ssub.s32 %s7, 1
    %s13 = ssub.s32 %s7, 2
    %s14 = sadd.s32 %s7, 1
    %s15 = ssub.s32 %s7, %s14
    %p16 = scmp.eq.s32.totalorder %s15, 0
    %s18 = sadd.s32 %s17, 1
    %s19 = scalar_select %p16, %s17, %s18
    %p22 = pneg %p16
    %p23 = scmp.eq.s32.totalorder %s7, 1
    %p24 = por %p22, %p23
    %p25 = scmp.ne.s32.totalorder %s17, %s20
    %p26 = scmp.eq.s32.totalorder %s7, 0
    %p27 = por %p25, %p26
    %p28 = scmp.ne.s32.totalorder %s17, %s20
    %p29 = scmp.eq.s32.totalorder %s12, 1
    %p30 = por %p28, %p29
    %p31 = scmp.ne.s32.totalorder %s20, %s21
    %p32 = scmp.eq.s32.totalorder %s12, 0
    %p33 = por %p31, %p32
    %p34 = scmp.ne.s32.totalorder %s20, %s21
    %p35 = scmp.eq.s32.totalorder %s13, 1
    %p36 = por %p34, %p35
    %p38 = scmp.ne.s32.totalorder %s21, %s37
    %p39 = scmp.eq.s32.totalorder %s13, 0
    %p40 = por %p38, %p39
    %s41 = ssub.s32 %s7, %s14
    %p42 = scmp.eq.s32.totalorder %s41, 0
    %s44 = sadd.s32 %s43, 1
    %s45 = scalar_select %p42, %s43, %s44
    %p48 = pneg %p42
    %p49 = scmp.eq.s32.totalorder %s7, 1
    %p50 = por %p48, %p49
    %p51 = scmp.ne.s32.totalorder %s43, %s46
    %p52 = scmp.eq.s32.totalorder %s7, 0
    %p53 = por %p51, %p52
    %p54 = scmp.ne.s32.totalorder %s43, %s46
    %p55 = scmp.eq.s32.totalorder %s12, 1
    %p56 = por %p54, %p55
    %p57 = scmp.ne.s32.totalorder %s46, %s47
    %p58 = scmp.eq.s32.totalorder %s12, 0
    %p59 = por %p57, %p58
    %p60 = scmp.ne.s32.totalorder %s46, %s47
    %p61 = scmp.eq.s32.totalorder %s13, 1
    %p62 = por %p60, %p61
    %p64 = scmp.ne.s32.totalorder %s47, %s63
    %p65 = scmp.eq.s32.totalorder %s13, 0
    %p66 = por %p64, %p65
    %p67 = scmp.le.s32.totalorder 1, %s7
    %p68 = scmp.lt.s32.totalorder %s7, 3
    %p69 = pnand %p67, %p68
    %p70 = pneg %p69
    // Predicated region
    $region9: #{tpu_custom_call.1} parent=5 // pred_check
      _
    $region10: #{tpu_custom_call.1} parent=5 // pred_check_branch
      %72 = sbr.rel (%p69) target = $region12
    $region11: #{tpu_custom_call.1} parent=5 // pred_region
      %s73 = ssub.s32 %s7, 1
    $region12: #{tpu_custom_call.1} parent=5 // pred_fallthru
      _
    %p74 = scmp.lt.s32.totalorder %s7, 2
    // Predicated region
    $region13: #{tpu_custom_call.1} parent=5 // pred_check
      %p75 = pneg %p74
    $region14: #{tpu_custom_call.1} parent=5 // pred_check_branch
      %77 = sbr.rel (%p75) target = $region16
    $region15: #{tpu_custom_call.1} parent=5 // pred_region
      // Predicated region
      $region17: #{tpu_custom_call.1} parent=15 // pred_check
        %p78 = pneg %p27
      $region18: #{tpu_custom_call.1} parent=15 // pred_check_branch
        %80 = sbr.rel (%p78) target = $region20
      $region19: #{tpu_custom_call.1} parent=15 // pred_region
        %s81 = smul.u32 13, %s7
        %p82 = scmp.lt.s32.totalorder %s81, 25
        %s83 = scalar_select %p82, %s81, 25
        %s84 = smul.addr %s83, 8
        %s85 = scalar_lea.vmem %s0, %s84
        %s86 = smul.u32 13, %s7
      $region20: #{tpu_custom_call.1} parent=15 // pred_fallthru
        _
    $region16: #{tpu_custom_call.1} parent=5 // pred_fallthru
      _
    %p87 = scmp.le.s32.totalorder 1, %s7
    %p88 = scmp.lt.s32.totalorder %s7, 3
    %p89 = pnand %p87, %p88
    %p90 = pneg %p89
    // Predicated region
    $region21: #{tpu_custom_call.1} parent=5 // pred_check
      _
    $region22: #{tpu_custom_call.1} parent=5 // pred_check_branch
      %92 = sbr.rel (%p89) target = $region24
    $region23: #{tpu_custom_call.1} parent=5 // pred_region
      %s93 = ssub.s32 %s7, 1
      %s94 = smul.u32 13, %s12
      %p95 = scmp.lt.s32.totalorder %s94, 25
      %s96 = scalar_select %p95, %s94, 25
      %s97 = smul.addr %s96, 8
      %s98 = scalar_lea.vmem %s0, %s97
      %p99 = pneg %p33
      %p100 = pneg %p30
      %p101 = pneg %p59
      %p102 = pneg %p56
      %s103 = smul.u32 13, %s12
      %p104 = scmp.lt.s32.totalorder %s103, 25
      %s105 = scalar_select %p104, %s103, 25
      %s106 = smul.addr %s105, 8
      %s107 = scalar_lea.vmem %s1, %s106
      %s108 = smul.u32 13, %s12
      %p109 = scmp.lt.s32.totalorder %s108, 25
      %s110 = scalar_select %p109, %s108, 25
      %s111 = smul.addr %s110, 8
      %s112 = scalar_lea.vmem %s0, %s111
      %s113 = smul.u32 13, %s12
      %s114 = smul.u32 13, %s12
      %p115 = scmp.lt.s32.totalorder %s114, 25
      %s116 = scalar_select %p115, %s114, 25
      %s117 = smul.addr %s116, 8
      %s118 = scalar_lea.vmem %s1, %s117
      %s119 = smul.u32 13, %s12
      %v120 = vlaneseq
      %v121 = vand.u32 %v120, 127
      %v122 = vadd.s32 %v121, 1
      %v123 = vcvt.s32.f32 %v122
      %v124 = vmul.f32 %v123, 0.62831855
      %v125 = vld [vmem:[%s112] sm:$0xff]
      %v126 = vld [vmem:[%s112 + $0x8] sm:$0xff]
      %v127 = vld [vmem:[%s112 + $0x10] sm:$0xff]
      %v128 = vld [vmem:[%s112 + $0x18] sm:$0xff]
      %v129 = vld [vmem:[%s112 + $0x20] sm:$0xff]
      %v130 = vld [vmem:[%s112 + $0x28] sm:$0xff]
      %v131 = vld [vmem:[%s112 + $0x30] sm:$0xff]
      %v132 = vld [vmem:[%s112 + $0x38] sm:$0xff]
      %v133 = vld [vmem:[%s112 + $0x40] sm:$0xff]
      %v134 = vld [vmem:[%s112 + $0x48] sm:$0xff]
      %v135 = vld [vmem:[%s112 + $0x50] sm:$0xff]
      %v136 = vld [vmem:[%s112 + $0x58] sm:$0xff]
      %v137 = vld [vmem:[%s112 + $0x60] sm:$0xff]
      %vm138 = vcmp.eq.f32.partialorder %v125, 0.0
      %vm139 = vcmp.eq.f32.partialorder %v126, 0.0
      %vm140 = vcmp.eq.f32.partialorder %v127, 0.0
      %vm141 = vcmp.eq.f32.partialorder %v128, 0.0
      %vm142 = vcmp.eq.f32.partialorder %v129, 0.0
      %vm143 = vcmp.eq.f32.partialorder %v130, 0.0
      %vm144 = vcmp.eq.f32.partialorder %v131, 0.0
      %vm145 = vcmp.eq.f32.partialorder %v132, 0.0
      %vm146 = vcmp.eq.f32.partialorder %v133, 0.0
      %vm147 = vcmp.eq.f32.partialorder %v134, 0.0
      %vm148 = vcmp.eq.f32.partialorder %v135, 0.0
      %vm149 = vcmp.eq.f32.partialorder %v136, 0.0
      %vm150 = vcmp.eq.f32.partialorder %v137, 0.0
      %v151 = vrcp.pop %v125
      %v152 = vmul.f32 1.0, %v151
      %v153 = vrcp.pop %v126
      %v154 = vmul.f32 1.0, %v153
      %v155 = vrcp.pop %v127
      %v156 = vmul.f32 1.0, %v155
      %v157 = vrcp.pop %v128
      %v158 = vmul.f32 1.0, %v157
      %v159 = vrcp.pop %v129
      %v160 = vmul.f32 1.0, %v159
      %v161 = vrcp.pop %v130
      %v162 = vmul.f32 1.0, %v161
      %v163 = vrcp.pop %v131
      %v164 = vmul.f32 1.0, %v163
      %v165 = vrcp.pop %v132
      %v166 = vmul.f32 1.0, %v165
      %v167 = vrcp.pop %v133
      %v168 = vmul.f32 1.0, %v167
      %v169 = vrcp.pop %v134
      %v170 = vmul.f32 1.0, %v169
      %v171 = vrcp.pop %v135
      %v172 = vmul.f32 1.0, %v171
      %v173 = vrcp.pop %v136
      %v174 = vmul.f32 1.0, %v173
      %v175 = vrcp.pop %v137
      %v176 = vmul.f32 1.0, %v175
      %v177 = vsel %vm138, 1.0, %v152
      %v178 = vsel %vm139, 1.0, %v154
      %v179 = vsel %vm140, 1.0, %v156
      %v180 = vsel %vm141, 1.0, %v158
      %v181 = vsel %vm142, 1.0, %v160
      %v182 = vsel %vm143, 1.0, %v162
      %v183 = vsel %vm144, 1.0, %v164
      %v184 = vsel %vm145, 1.0, %v166
      %v185 = vsel %vm146, 1.0, %v168
      %v186 = vsel %vm147, 1.0, %v170
      %v187 = vsel %vm148, 1.0, %v172
      %v188 = vsel %vm149, 1.0, %v174
      %v189 = vsel %vm150, 1.0, %v176
      %191 = vset.pattern.permute.xlu0 0
      %192 = vperm.xlu0 %191, %v125
      %v193 = vpop.permute.xlu0 %192
      %196 = vset.pattern.permute.xlu0 0
      %197 = vperm.xlu0 %196, %v126
      %v198 = vpop.permute.xlu0 %197
      %201 = vset.pattern.permute.xlu0 0
      %202 = vperm.xlu0 %201, %v127
      %v203 = vpop.permute.xlu0 %202
      %206 = vset.pattern.permute.xlu0 0
      %207 = vperm.xlu0 %206, %v128
      %v208 = vpop.permute.xlu0 %207
      %211 = vset.pattern.permute.xlu0 0
      %212 = vperm.xlu0 %211, %v129
      %v213 = vpop.permute.xlu0 %212
      %216 = vset.pattern.permute.xlu0 0
      %217 = vperm.xlu0 %216, %v130
      %v218 = vpop.permute.xlu0 %217
      %221 = vset.pattern.permute.xlu0 0
      %222 = vperm.xlu0 %221, %v131
      %v223 = vpop.permute.xlu0 %222
      %226 = vset.pattern.permute.xlu0 0
      %227 = vperm.xlu0 %226, %v132
      %v228 = vpop.permute.xlu0 %227
      %231 = vset.pattern.permute.xlu0 0
      %232 = vperm.xlu0 %231, %v133
      %v233 = vpop.permute.xlu0 %232
      %236 = vset.pattern.permute.xlu0 0
      %237 = vperm.xlu0 %236, %v134
      %v238 = vpop.permute.xlu0 %237
      %241 = vset.pattern.permute.xlu0 0
      %242 = vperm.xlu0 %241, %v135
      %v243 = vpop.permute.xlu0 %242
      %246 = vset.pattern.permute.xlu0 0
      %247 = vperm.xlu0 %246, %v136
      %v248 = vpop.permute.xlu0 %247
      %251 = vset.pattern.permute.xlu0 0
      %252 = vperm.xlu0 %251, %v137
      %v253 = vpop.permute.xlu0 %252
      %v255 = vmul.f32 %v193, %v124
      %v256 = vmul.f32 %v198, %v124
      %v257 = vmul.f32 %v203, %v124
      %v258 = vmul.f32 %v208, %v124
      %v259 = vmul.f32 %v213, %v124
      %v260 = vmul.f32 %v218, %v124
      %v261 = vmul.f32 %v223, %v124
      %v262 = vmul.f32 %v228, %v124
      %v263 = vmul.f32 %v233, %v124
      %v264 = vmul.f32 %v238, %v124
      %v265 = vmul.f32 %v243, %v124
      %v266 = vmul.f32 %v248, %v124
      %v267 = vmul.f32 %v253, %v124
      %v268 = vand.u32 2147483647, %v255
      %vm269 = vcmp.le.f32.partialorder %v268, 0.7853982
      %vm270 = vcmp.lt.s32.totalorder %v255, 0
      %v271 = vand.u32 %v255, 2139095040
      %v272 = vshrl.u32 %v271, 23
      %v273 = vsub.s32 %v272, 127
      %v274 = vand.u32 2147483647, %v255
      %v275 = vand.u32 %v274, 8388607
      %v276 = vor.u32 %v275, 8388608
      %v277 = vsub.s32 0, %v276
      %v278 = vadd.s32 %v273, 1
      %vm279 = vcmp.gt.s32.totalorder %v278, 0
      %v280 = vsel %vm279, %v278, 0
      %v281 = vshrl.u32 %v280, 5
      %v282 = vand.u32 %v280, 31
      %v283 = vsub.s32 32, %v282
      %v284 = vshrl.u32 683565275, %v283
      %v285 = vshll.u32 683565275, %v282
      %v286 = vshrl.u32 2475754826, %v283
      %v287 = vor.u32 %v285, %v286
      %v288 = vshll.u32 2475754826, %v282
      %v289 = vshrl.u32 2131351028, %v283
      %v290 = vor.u32 %v288, %v289
      %v291 = vshll.u32 2131351028, %v282
      %v292 = vshrl.u32 2102212464, %v283
      %v293 = vor.u32 %v291, %v292
      %v294 = vshll.u32 2102212464, %v282
      %v295 = vshrl.u32 920167782, %v283
      %v296 = vor.u32 %v294, %v295
      %v297 = vshll.u32 920167782, %v282
      %v298 = vshrl.u32 1326507024, %v283
      %v299 = vor.u32 %v297, %v298
      %vm300 = vcmp.lt.s32.totalorder %v281, 1
      %vm301 = vcmp.lt.s32.totalorder %v281, 2
      %vm302 = vcmp.lt.s32.totalorder %v281, 3
      %vm303 = vcmp.lt.s32.totalorder %v281, 4
      %v304 = vsel %vm300, %v284, %v287
      %v305 = vsel %vm303, %v293, 2102212464
      %v306 = vsel %vm302, %v290, %v305
      %v307 = vsel %vm301, %v304, %v306
      %v308 = vsel %vm300, %v287, %v290
      %v309 = vsel %vm303, %v296, 920167782
      %v310 = vsel %vm302, %v293, %v309
      %v311 = vsel %vm301, %v308, %v310
      %v312 = vsel %vm300, %v290, %v293
      %v313 = vsel %vm303, %v299, 1326507024
      %v314 = vsel %vm302, %v296, %v313
      %v315 = vsel %vm301, %v312, %v314
      %v316 = vshll.u32 %v276, 8
      %v317 = vmul.u32.u64.compose %v316, %v315
      %v318 = vextract.low.u32 %v317
      %v319 = vextract.high.u32 %v317
      %v320 = vmul.u32.u64.compose %v316, %v311
      %v321 = vextract.low.u32 %v320
      %v322 = vextract.high.u32 %v320
      %v323 = vmul.u32 %v316, %v307
      %v324 = vadd.s32 %v319, %v321
      %vm325 = vc.u32 %v319, %v321
      %v326 = vadd.s32 %v322, 1
      %v327 = vsel %vm325, %v326, %v322
      %v328 = vadd.s32 %v323, %v327
      %v329 = vadd.s32 %v328, 536870912
      %v330 = vshrl.u32 %v329, 30
      %v331 = vshll.u32 %v330, 30
      %v332 = vsub.s32 %v328, %v331
      %vm333 = vcmp.lt.s32.totalorder %v332, 0
      %v334 = vsub.s32 0, %v332
      %v335 = vsel %vm333, %v334, %v332
      %v336 = vclz %v335
      %v337 = vsub.s32 %v336, 2
      %vm338 = vcmp.gt.s32.totalorder 0, %v337
      %v339 = vsel %vm338, 0, %v337
      %v340 = vsub.s32 32, %v339
      %v341 = vshll.u32 %v332, %v339
      %v342 = vshrl.u32 %v324, %v340
      %v343 = vor.u32 %v341, %v342
      %v344 = vsub.s32 4294967266, %v339
      %v345 = vadd.s32 %v344, 127
      %v346 = vshll.u32 %v345, 23
      %v347 = vor.u32 4788187, %v346
      %v348 = vand.u32 2147483647, %v347
      %v350 = vcvt.s32.f32 %v343
      %v351 = vmul.f32 %v350, %v348
      %v352 = vxor.u32 %v351, 2147483648
      %v353 = vsel %vm270, %v352, %v351
      %v354 = vsub.s32 4, %v330
      %v355 = vsel %vm270, %v354, %v330
      %v356 = vsel %vm269, %v255, %v353
      %v357 = vsel %vm269, 0, %v355
      %v358 = vcosq.f32.pop %v356
      %v359 = vsinq.f32.pop %v356
      %vm360 = vweird.f32 %v255
      %v361 = vadd.s32 %v357, 3
      %v362 = vand.u32 %v361, 3
      %vm363 = vcmp.lt.s32.totalorder %v362, 2
      %vm364 = vcmp.eq.s32.totalorder %v362, 0
      %v365 = vxor.u32 %v359, 2147483648
      %v366 = vsel %vm364, %v358, %v365
      %vm367 = vcmp.eq.s32.totalorder %v362, 2
      %v368 = vxor.u32 %v358, 2147483648
      %v369 = vsel %vm367, %v368, %v359
      %v370 = vsel %vm363, %v366, %v369
      %v371 = vsel %vm360, nan, %v370
      %v372 = vand.u32 2147483647, %v256
      %vm373 = vcmp.le.f32.partialorder %v372, 0.7853982
      %vm374 = vcmp.lt.s32.totalorder %v256, 0
      %v375 = vand.u32 %v256, 2139095040
      %v376 = vshrl.u32 %v375, 23
      %v377 = vsub.s32 %v376, 127
      %v378 = vand.u32 2147483647, %v256
      %v379 = vand.u32 %v378, 8388607
      %v380 = vor.u32 %v379, 8388608
      %v381 = vsub.s32 0, %v380
      %v382 = vadd.s32 %v377, 1
      %vm383 = vcmp.gt.s32.totalorder %v382, 0
      %v384 = vsel %vm383, %v382, 0
      %v385 = vshrl.u32 %v384, 5
      %v386 = vand.u32 %v384, 31
      %v387 = vsub.s32 32, %v386
      %v388 = vshrl.u32 683565275, %v387
      %v389 = vshll.u32 683565275, %v386
      %v390 = vshrl.u32 2475754826, %v387
      %v391 = vor.u32 %v389, %v390
      %v392 = vshll.u32 2475754826, %v386
      %v393 = vshrl.u32 2131351028, %v387
      %v394 = vor.u32 %v392, %v393
      %v395 = vshll.u32 2131351028, %v386
      %v396 = vshrl.u32 2102212464, %v387
      %v397 = vor.u32 %v395, %v396
      %v398 = vshll.u32 2102212464, %v386
      %v399 = vshrl.u32 920167782, %v387
      %v400 = vor.u32 %v398, %v399
      %v401 = vshll.u32 920167782, %v386
      %v402 = vshrl.u32 1326507024, %v387
      %v403 = vor.u32 %v401, %v402
      %vm404 = vcmp.lt.s32.totalorder %v385, 1
      %vm405 = vcmp.lt.s32.totalorder %v385, 2
      %vm406 = vcmp.lt.s32.totalorder %v385, 3
      %vm407 = vcmp.lt.s32.totalorder %v385, 4
      %v408 = vsel %vm404, %v388, %v391
      %v409 = vsel %vm407, %v397, 2102212464
      %v410 = vsel %vm406, %v394, %v409
      %v411 = vsel %vm405, %v408, %v410
      %v412 = vsel %vm404, %v391, %v394
      %v413 = vsel %vm407, %v400, 920167782
      %v414 = vsel %vm406, %v397, %v413
      %v415 = vsel %vm405, %v412, %v414
      %v416 = vsel %vm404, %v394, %v397
      %v417 = vsel %vm407, %v403, 1326507024
      %v418 = vsel %vm406, %v400, %v417
      %v419 = vsel %vm405, %v416, %v418
      %v420 = vshll.u32 %v380, 8
      %v421 = vmul.u32.u64.compose %v420, %v419
      %v422 = vextract.low.u32 %v421
      %v423 = vextract.high.u32 %v421
      %v424 = vmul.u32.u64.compose %v420, %v415
      %v425 = vextract.low.u32 %v424
      %v426 = vextract.high.u32 %v424
      %v427 = vmul.u32 %v420, %v411
      %v428 = vadd.s32 %v423, %v425
      %vm429 = vc.u32 %v423, %v425
      %v430 = vadd.s32 %v426, 1
      %v431 = vsel %vm429, %v430, %v426
      %v432 = vadd.s32 %v427, %v431
      %v433 = vadd.s32 %v432, 536870912
      %v434 = vshrl.u32 %v433, 30
      %v435 = vshll.u32 %v434, 30
      %v436 = vsub.s32 %v432, %v435
      %vm437 = vcmp.lt.s32.totalorder %v436, 0
      %v438 = vsub.s32 0, %v436
      %v439 = vsel %vm437, %v438, %v436
      %v440 = vclz %v439
      %v441 = vsub.s32 %v440, 2
      %vm442 = vcmp.gt.s32.totalorder 0, %v441
      %v443 = vsel %vm442, 0, %v441
      %v444 = vsub.s32 32, %v443
      %v445 = vshll.u32 %v436, %v443
      %v446 = vshrl.u32 %v428, %v444
      %v447 = vor.u32 %v445, %v446
      %v448 = vsub.s32 4294967266, %v443
      %v449 = vadd.s32 %v448, 127
      %v450 = vshll.u32 %v449, 23
      %v451 = vor.u32 4788187, %v450
      %v452 = vand.u32 2147483647, %v451
      %v454 = vcvt.s32.f32 %v447
      %v455 = vmul.f32 %v454, %v452
      %v456 = vxor.u32 %v455, 2147483648
      %v457 = vsel %vm374, %v456, %v455
      %v458 = vsub.s32 4, %v434
      %v459 = vsel %vm374, %v458, %v434
      %v460 = vsel %vm373, %v256, %v457
      %v461 = vsel %vm373, 0, %v459
      %v462 = vcosq.f32.pop %v460
      %v463 = vsinq.f32.pop %v460
      %vm464 = vweird.f32 %v256
      %v465 = vadd.s32 %v461, 3
      %v466 = vand.u32 %v465, 3
      %vm467 = vcmp.lt.s32.totalorder %v466, 2
      %vm468 = vcmp.eq.s32.totalorder %v466, 0
      %v469 = vxor.u32 %v463, 2147483648
      %v470 = vsel %vm468, %v462, %v469
      %vm471 = vcmp.eq.s32.totalorder %v466, 2
      %v472 = vxor.u32 %v462, 2147483648
      %v473 = vsel %vm471, %v472, %v463
      %v474 = vsel %vm467, %v470, %v473
      %v475 = vsel %vm464, nan, %v474
      %v476 = vand.u32 2147483647, %v257
      %vm477 = vcmp.le.f32.partialorder %v476, 0.7853982
      %vm478 = vcmp.lt.s32.totalorder %v257, 0
      %v479 = vand.u32 %v257, 2139095040
      %v480 = vshrl.u32 %v479, 23
      %v481 = vsub.s32 %v480, 127
      %v482 = vand.u32 2147483647, %v257
      %v483 = vand.u32 %v482, 8388607
      %v484 = vor.u32 %v483, 8388608
      %v485 = vsub.s32 0, %v484
      %v486 = vadd.s32 %v481, 1
      %vm487 = vcmp.gt.s32.totalorder %v486, 0
      %v488 = vsel %vm487, %v486, 0
      %v489 = vshrl.u32 %v488, 5
      %v490 = vand.u32 %v488, 31
      %v491 = vsub.s32 32, %v490
      %v492 = vshrl.u32 683565275, %v491
      %v493 = vshll.u32 683565275, %v490
      %v494 = vshrl.u32 2475754826, %v491
      %v495 = vor.u32 %v493, %v494
      %v496 = vshll.u32 2475754826, %v490
      %v497 = vshrl.u32 2131351028, %v491
      %v498 = vor.u32 %v496, %v497
      %v499 = vshll.u32 2131351028, %v490
      %v500 = vshrl.u32 2102212464, %v491
      %v501 = vor.u32 %v499, %v500
      %v502 = vshll.u32 2102212464, %v490
      %v503 = vshrl.u32 920167782, %v491
      %v504 = vor.u32 %v502, %v503
      %v505 = vshll.u32 920167782, %v490
      %v506 = vshrl.u32 1326507024, %v491
      %v507 = vor.u32 %v505, %v506
      %vm508 = vcmp.lt.s32.totalorder %v489, 1
      %vm509 = vcmp.lt.s32.totalorder %v489, 2
      %vm510 = vcmp.lt.s32.totalorder %v489, 3
      %vm511 = vcmp.lt.s32.totalorder %v489, 4
      %v512 = vsel %vm508, %v492, %v495
      %v513 = vsel %vm511, %v501, 2102212464
      %v514 = vsel %vm510, %v498, %v513
      %v515 = vsel %vm509, %v512, %v514
      %v516 = vsel %vm508, %v495, %v498
      %v517 = vsel %vm511, %v504, 920167782
      %v518 = vsel %vm510, %v501, %v517
      %v519 = vsel %vm509, %v516, %v518
      %v520 = vsel %vm508, %v498, %v501
      %v521 = vsel %vm511, %v507, 1326507024
      %v522 = vsel %vm510, %v504, %v521
      %v523 = vsel %vm509, %v520, %v522
      %v524 = vshll.u32 %v484, 8
      %v525 = vmul.u32.u64.compose %v524, %v523
      %v526 = vextract.low.u32 %v525
      %v527 = vextract.high.u32 %v525
      %v528 = vmul.u32.u64.compose %v524, %v519
      %v529 = vextract.low.u32 %v528
      %v530 = vextract.high.u32 %v528
      %v531 = vmul.u32 %v524, %v515
      %v532 = vadd.s32 %v527, %v529
      %vm533 = vc.u32 %v527, %v529
      %v534 = vadd.s32 %v530, 1
      %v535 = vsel %vm533, %v534, %v530
      %v536 = vadd.s32 %v531, %v535
      %v537 = vadd.s32 %v536, 536870912
      %v538 = vshrl.u32 %v537, 30
      %v539 = vshll.u32 %v538, 30
      %v540 = vsub.s32 %v536, %v539
      %vm541 = vcmp.lt.s32.totalorder %v540, 0
      %v542 = vsub.s32 0, %v540
      %v543 = vsel %vm541, %v542, %v540
      %v544 = vclz %v543
      %v545 = vsub.s32 %v544, 2
      %vm546 = vcmp.gt.s32.totalorder 0, %v545
      %v547 = vsel %vm546, 0, %v545
      %v548 = vsub.s32 32, %v547
      %v549 = vshll.u32 %v540, %v547
      %v550 = vshrl.u32 %v532, %v548
      %v551 = vor.u32 %v549, %v550
      %v552 = vsub.s32 4294967266, %v547
      %v553 = vadd.s32 %v552, 127
      %v554 = vshll.u32 %v553, 23
      %v555 = vor.u32 4788187, %v554
      %v556 = vand.u32 2147483647, %v555
      %v558 = vcvt.s32.f32 %v551
      %v559 = vmul.f32 %v558, %v556
      %v560 = vxor.u32 %v559, 2147483648
      %v561 = vsel %vm478, %v560, %v559
      %v562 = vsub.s32 4, %v538
      %v563 = vsel %vm478, %v562, %v538
      %v564 = vsel %vm477, %v257, %v561
      %v565 = vsel %vm477, 0, %v563
      %v566 = vcosq.f32.pop %v564
      %v567 = vsinq.f32.pop %v564
      %vm568 = vweird.f32 %v257
      %v569 = vadd.s32 %v565, 3
      %v570 = vand.u32 %v569, 3
      %vm571 = vcmp.lt.s32.totalorder %v570, 2
      %vm572 = vcmp.eq.s32.totalorder %v570, 0
      %v573 = vxor.u32 %v567, 2147483648
      %v574 = vsel %vm572, %v566, %v573
      %vm575 = vcmp.eq.s32.totalorder %v570, 2
      %v576 = vxor.u32 %v566, 2147483648
      %v577 = vsel %vm575, %v576, %v567
      %v578 = vsel %vm571, %v574, %v577
      %v579 = vsel %vm568, nan, %v578
      %v580 = vand.u32 2147483647, %v258
      %vm581 = vcmp.le.f32.partialorder %v580, 0.7853982
      %vm582 = vcmp.lt.s32.totalorder %v258, 0
      %v583 = vand.u32 %v258, 2139095040
      %v584 = vshrl.u32 %v583, 23
      %v585 = vsub.s32 %v584, 127
      %v586 = vand.u32 2147483647, %v258
      %v587 = vand.u32 %v586, 8388607
      %v588 = vor.u32 %v587, 8388608
      %v589 = vsub.s32 0, %v588
      %v590 = vadd.s32 %v585, 1
      %vm591 = vcmp.gt.s32.totalorder %v590, 0
      %v592 = vsel %vm591, %v590, 0
      %v593 = vshrl.u32 %v592, 5
      %v594 = vand.u32 %v592, 31
      %v595 = vsub.s32 32, %v594
      %v596 = vshrl.u32 683565275, %v595
      %v597 = vshll.u32 683565275, %v594
      %v598 = vshrl.u32 2475754826, %v595
      %v599 = vor.u32 %v597, %v598
      %v600 = vshll.u32 2475754826, %v594
      %v601 = vshrl.u32 2131351028, %v595
      %v602 = vor.u32 %v600, %v601
      %v603 = vshll.u32 2131351028, %v594
      %v604 = vshrl.u32 2102212464, %v595
      %v605 = vor.u32 %v603, %v604
      %v606 = vshll.u32 2102212464, %v594
      %v607 = vshrl.u32 920167782, %v595
      %v608 = vor.u32 %v606, %v607
      %v609 = vshll.u32 920167782, %v594
      %v610 = vshrl.u32 1326507024, %v595
      %v611 = vor.u32 %v609, %v610
      %vm612 = vcmp.lt.s32.totalorder %v593, 1
      %vm613 = vcmp.lt.s32.totalorder %v593, 2
      %vm614 = vcmp.lt.s32.totalorder %v593, 3
      %vm615 = vcmp.lt.s32.totalorder %v593, 4
      %v616 = vsel %vm612, %v596, %v599
      %v617 = vsel %vm615, %v605, 2102212464
      %v618 = vsel %vm614, %v602, %v617
      %v619 = vsel %vm613, %v616, %v618
      %v620 = vsel %vm612, %v599, %v602
      %v621 = vsel %vm615, %v608, 920167782
      %v622 = vsel %vm614, %v605, %v621
      %v623 = vsel %vm613, %v620, %v622
      %v624 = vsel %vm612, %v602, %v605
      %v625 = vsel %vm615, %v611, 1326507024
      %v626 = vsel %vm614, %v608, %v625
      %v627 = vsel %vm613, %v624, %v626
      %v628 = vshll.u32 %v588, 8
      %v629 = vmul.u32.u64.compose %v628, %v627
      %v630 = vextract.low.u32 %v629
      %v631 = vextract.high.u32 %v629
      %v632 = vmul.u32.u64.compose %v628, %v623
      %v633 = vextract.low.u32 %v632
      %v634 = vextract.high.u32 %v632
      %v635 = vmul.u32 %v628, %v619
      %v636 = vadd.s32 %v631, %v633
      %vm637 = vc.u32 %v631, %v633
      %v638 = vadd.s32 %v634, 1
      %v639 = vsel %vm637, %v638, %v634
      %v640 = vadd.s32 %v635, %v639
      %v641 = vadd.s32 %v640, 536870912
      %v642 = vshrl.u32 %v641, 30
      %v643 = vshll.u32 %v642, 30
      %v644 = vsub.s32 %v640, %v643
      %vm645 = vcmp.lt.s32.totalorder %v644, 0
      %v646 = vsub.s32 0, %v644
      %v647 = vsel %vm645, %v646, %v644
      %v648 = vclz %v647
      %v649 = vsub.s32 %v648, 2
      %vm650 = vcmp.gt.s32.totalorder 0, %v649
      %v651 = vsel %vm650, 0, %v649
      %v652 = vsub.s32 32, %v651
      %v653 = vshll.u32 %v644, %v651
      %v654 = vshrl.u32 %v636, %v652
      %v655 = vor.u32 %v653, %v654
      %v656 = vsub.s32 4294967266, %v651
      %v657 = vadd.s32 %v656, 127
      %v658 = vshll.u32 %v657, 23
      %v659 = vor.u32 4788187, %v658
      %v660 = vand.u32 2147483647, %v659
      %v662 = vcvt.s32.f32 %v655
      %v663 = vmul.f32 %v662, %v660
      %v664 = vxor.u32 %v663, 2147483648
      %v665 = vsel %vm582, %v664, %v663
      %v666 = vsub.s32 4, %v642
      %v667 = vsel %vm582, %v666, %v642
      %v668 = vsel %vm581, %v258, %v665
      %v669 = vsel %vm581, 0, %v667
      %v670 = vcosq.f32.pop %v668
      %v671 = vsinq.f32.pop %v668
      %vm672 = vweird.f32 %v258
      %v673 = vadd.s32 %v669, 3
      %v674 = vand.u32 %v673, 3
      %vm675 = vcmp.lt.s32.totalorder %v674, 2
      %vm676 = vcmp.eq.s32.totalorder %v674, 0
      %v677 = vxor.u32 %v671, 2147483648
      %v678 = vsel %vm676, %v670, %v677
      %vm679 = vcmp.eq.s32.totalorder %v674, 2
      %v680 = vxor.u32 %v670, 2147483648
      %v681 = vsel %vm679, %v680, %v671
      %v682 = vsel %vm675, %v678, %v681
      %v683 = vsel %vm672, nan, %v682
      %v684 = vand.u32 2147483647, %v259
      %vm685 = vcmp.le.f32.partialorder %v684, 0.7853982
      %vm686 = vcmp.lt.s32.totalorder %v259, 0
      %v687 = vand.u32 %v259, 2139095040
      %v688 = vshrl.u32 %v687, 23
      %v689 = vsub.s32 %v688, 127
      %v690 = vand.u32 2147483647, %v259
      %v691 = vand.u32 %v690, 8388607
      %v692 = vor.u32 %v691, 8388608
      %v693 = vsub.s32 0, %v692
      %v694 = vadd.s32 %v689, 1
      %vm695 = vcmp.gt.s32.totalorder %v694, 0
      %v696 = vsel %vm695, %v694, 0
      %v697 = vshrl.u32 %v696, 5
      %v698 = vand.u32 %v696, 31
      %v699 = vsub.s32 32, %v698
      %v700 = vshrl.u32 683565275, %v699
      %v701 = vshll.u32 683565275, %v698
      %v702 = vshrl.u32 2475754826, %v699
      %v703 = vor.u32 %v701, %v702
      %v704 = vshll.u32 2475754826, %v698
      %v705 = vshrl.u32 2131351028, %v699
      %v706 = vor.u32 %v704, %v705
      %v707 = vshll.u32 2131351028, %v698
      %v708 = vshrl.u32 2102212464, %v699
      %v709 = vor.u32 %v707, %v708
      %v710 = vshll.u32 2102212464, %v698
      %v711 = vshrl.u32 920167782, %v699
      %v712 = vor.u32 %v710, %v711
      %v713 = vshll.u32 920167782, %v698
      %v714 = vshrl.u32 1326507024, %v699
      %v715 = vor.u32 %v713, %v714
      %vm716 = vcmp.lt.s32.totalorder %v697, 1
      %vm717 = vcmp.lt.s32.totalorder %v697, 2
      %vm718 = vcmp.lt.s32.totalorder %v697, 3
      %vm719 = vcmp.lt.s32.totalorder %v697, 4
      %v720 = vsel %vm716, %v700, %v703
      %v721 = vsel %vm719, %v709, 2102212464
      %v722 = vsel %vm718, %v706, %v721
      %v723 = vsel %vm717, %v720, %v722
      %v724 = vsel %vm716, %v703, %v706
      %v725 = vsel %vm719, %v712, 920167782
      %v726 = vsel %vm718, %v709, %v725
      %v727 = vsel %vm717, %v724, %v726
      %v728 = vsel %vm716, %v706, %v709
      %v729 = vsel %vm719, %v715, 1326507024
      %v730 = vsel %vm718, %v712, %v729
      %v731 = vsel %vm717, %v728, %v730
      %v732 = vshll.u32 %v692, 8
      %v733 = vmul.u32.u64.compose %v732, %v731
      %v734 = vextract.low.u32 %v733
      %v735 = vextract.high.u32 %v733
      %v736 = vmul.u32.u64.compose %v732, %v727
      %v737 = vextract.low.u32 %v736
      %v738 = vextract.high.u32 %v736
      %v739 = vmul.u32 %v732, %v723
      %v740 = vadd.s32 %v735, %v737
      %vm741 = vc.u32 %v735, %v737
      %v742 = vadd.s32 %v738, 1
      %v743 = vsel %vm741, %v742, %v738
      %v744 = vadd.s32 %v739, %v743
      %v745 = vadd.s32 %v744, 536870912
      %v746 = vshrl.u32 %v745, 30
      %v747 = vshll.u32 %v746, 30
      %v748 = vsub.s32 %v744, %v747
      %vm749 = vcmp.lt.s32.totalorder %v748, 0
      %v750 = vsub.s32 0, %v748
      %v751 = vsel %vm749, %v750, %v748
      %v752 = vclz %v751
      %v753 = vsub.s32 %v752, 2
      %vm754 = vcmp.gt.s32.totalorder 0, %v753
      %v755 = vsel %vm754, 0, %v753
      %v756 = vsub.s32 32, %v755
      %v757 = vshll.u32 %v748, %v755
      %v758 = vshrl.u32 %v740, %v756
      %v759 = vor.u32 %v757, %v758
      %v760 = vsub.s32 4294967266, %v755
      %v761 = vadd.s32 %v760, 127
      %v762 = vshll.u32 %v761, 23
      %v763 = vor.u32 4788187, %v762
      %v764 = vand.u32 2147483647, %v763
      %v766 = vcvt.s32.f32 %v759
      %v767 = vmul.f32 %v766, %v764
      %v768 = vxor.u32 %v767, 2147483648
      %v769 = vsel %vm686, %v768, %v767
      %v770 = vsub.s32 4, %v746
      %v771 = vsel %vm686, %v770, %v746
      %v772 = vsel %vm685, %v259, %v769
      %v773 = vsel %vm685, 0, %v771
      %v774 = vcosq.f32.pop %v772
      %v775 = vsinq.f32.pop %v772
      %vm776 = vweird.f32 %v259
      %v777 = vadd.s32 %v773, 3
      %v778 = vand.u32 %v777, 3
      %vm779 = vcmp.lt.s32.totalorder %v778, 2
      %vm780 = vcmp.eq.s32.totalorder %v778, 0
      %v781 = vxor.u32 %v775, 2147483648
      %v782 = vsel %vm780, %v774, %v781
      %vm783 = vcmp.eq.s32.totalorder %v778, 2
      %v784 = vxor.u32 %v774, 2147483648
      %v785 = vsel %vm783, %v784, %v775
      %v786 = vsel %vm779, %v782, %v785
      %v787 = vsel %vm776, nan, %v786
      %v788 = vand.u32 2147483647, %v260
      %vm789 = vcmp.le.f32.partialorder %v788, 0.7853982
      %vm790 = vcmp.lt.s32.totalorder %v260, 0
      %v791 = vand.u32 %v260, 2139095040
      %v792 = vshrl.u32 %v791, 23
      %v793 = vsub.s32 %v792, 127
      %v794 = vand.u32 2147483647, %v260
      %v795 = vand.u32 %v794, 8388607
      %v796 = vor.u32 %v795, 8388608
      %v797 = vsub.s32 0, %v796
      %v798 = vadd.s32 %v793, 1
      %vm799 = vcmp.gt.s32.totalorder %v798, 0
      %v800 = vsel %vm799, %v798, 0
      %v801 = vshrl.u32 %v800, 5
      %v802 = vand.u32 %v800, 31
      %v803 = vsub.s32 32, %v802
      %v804 = vshrl.u32 683565275, %v803
      %v805 = vshll.u32 683565275, %v802
      %v806 = vshrl.u32 2475754826, %v803
      %v807 = vor.u32 %v805, %v806
      %v808 = vshll.u32 2475754826, %v802
      %v809 = vshrl.u32 2131351028, %v803
      %v810 = vor.u32 %v808, %v809
      %v811 = vshll.u32 2131351028, %v802
      %v812 = vshrl.u32 2102212464, %v803
      %v813 = vor.u32 %v811, %v812
      %v814 = vshll.u32 2102212464, %v802
      %v815 = vshrl.u32 920167782, %v803
      %v816 = vor.u32 %v814, %v815
      %v817 = vshll.u32 920167782, %v802
      %v818 = vshrl.u32 1326507024, %v803
      %v819 = vor.u32 %v817, %v818
      %vm820 = vcmp.lt.s32.totalorder %v801, 1
      %vm821 = vcmp.lt.s32.totalorder %v801, 2
      %vm822 = vcmp.lt.s32.totalorder %v801, 3
      %vm823 = vcmp.lt.s32.totalorder %v801, 4
      %v824 = vsel %vm820, %v804, %v807
      %v825 = vsel %vm823, %v813, 2102212464
      %v826 = vsel %vm822, %v810, %v825
      %v827 = vsel %vm821, %v824, %v826
      %v828 = vsel %vm820, %v807, %v810
      %v829 = vsel %vm823, %v816, 920167782
      %v830 = vsel %vm822, %v813, %v829
      %v831 = vsel %vm821, %v828, %v830
      %v832 = vsel %vm820, %v810, %v813
      %v833 = vsel %vm823, %v819, 1326507024
      %v834 = vsel %vm822, %v816, %v833
      %v835 = vsel %vm821, %v832, %v834
      %v836 = vshll.u32 %v796, 8
      %v837 = vmul.u32.u64.compose %v836, %v835
      %v838 = vextract.low.u32 %v837
      %v839 = vextract.high.u32 %v837
      %v840 = vmul.u32.u64.compose %v836, %v831
      %v841 = vextract.low.u32 %v840
      %v842 = vextract.high.u32 %v840
      %v843 = vmul.u32 %v836, %v827
      %v844 = vadd.s32 %v839, %v841
      %vm845 = vc.u32 %v839, %v841
      %v846 = vadd.s32 %v842, 1
      %v847 = vsel %vm845, %v846, %v842
      %v848 = vadd.s32 %v843, %v847
      %v849 = vadd.s32 %v848, 536870912
      %v850 = vshrl.u32 %v849, 30
      %v851 = vshll.u32 %v850, 30
      %v852 = vsub.s32 %v848, %v851
      %vm853 = vcmp.lt.s32.totalorder %v852, 0
      %v854 = vsub.s32 0, %v852
      %v855 = vsel %vm853, %v854, %v852
      %v856 = vclz %v855
      %v857 = vsub.s32 %v856, 2
      %vm858 = vcmp.gt.s32.totalorder 0, %v857
      %v859 = vsel %vm858, 0, %v857
      %v860 = vsub.s32 32, %v859
      %v861 = vshll.u32 %v852, %v859
      %v862 = vshrl.u32 %v844, %v860
      %v863 = vor.u32 %v861, %v862
      %v864 = vsub.s32 4294967266, %v859
      %v865 = vadd.s32 %v864, 127
      %v866 = vshll.u32 %v865, 23
      %v867 = vor.u32 4788187, %v866
      %v868 = vand.u32 2147483647, %v867
      %v870 = vcvt.s32.f32 %v863
      %v871 = vmul.f32 %v870, %v868
      %v872 = vxor.u32 %v871, 2147483648
      %v873 = vsel %vm790, %v872, %v871
      %v874 = vsub.s32 4, %v850
      %v875 = vsel %vm790, %v874, %v850
      %v876 = vsel %vm789, %v260, %v873
      %v877 = vsel %vm789, 0, %v875
      %v878 = vcosq.f32.pop %v876
      %v879 = vsinq.f32.pop %v876
      %vm880 = vweird.f32 %v260
      %v881 = vadd.s32 %v877, 3
      %v882 = vand.u32 %v881, 3
      %vm883 = vcmp.lt.s32.totalorder %v882, 2
      %vm884 = vcmp.eq.s32.totalorder %v882, 0
      %v885 = vxor.u32 %v879, 2147483648
      %v886 = vsel %vm884, %v878, %v885
      %vm887 = vcmp.eq.s32.totalorder %v882, 2
      %v888 = vxor.u32 %v878, 2147483648
      %v889 = vsel %vm887, %v888, %v879
      %v890 = vsel %vm883, %v886, %v889
      %v891 = vsel %vm880, nan, %v890
      %v892 = vand.u32 2147483647, %v261
      %vm893 = vcmp.le.f32.partialorder %v892, 0.7853982
      %vm894 = vcmp.lt.s32.totalorder %v261, 0
      %v895 = vand.u32 %v261, 2139095040
      %v896 = vshrl.u32 %v895, 23
      %v897 = vsub.s32 %v896, 127
      %v898 = vand.u32 2147483647, %v261
      %v899 = vand.u32 %v898, 8388607
      %v900 = vor.u32 %v899, 8388608
      %v901 = vsub.s32 0, %v900
      %v902 = vadd.s32 %v897, 1
      %vm903 = vcmp.gt.s32.totalorder %v902, 0
      %v904 = vsel %vm903, %v902, 0
      %v905 = vshrl.u32 %v904, 5
      %v906 = vand.u32 %v904, 31
      %v907 = vsub.s32 32, %v906
      %v908 = vshrl.u32 683565275, %v907
      %v909 = vshll.u32 683565275, %v906
      %v910 = vshrl.u32 2475754826, %v907
      %v911 = vor.u32 %v909, %v910
      %v912 = vshll.u32 2475754826, %v906
      %v913 = vshrl.u32 2131351028, %v907
      %v914 = vor.u32 %v912, %v913
      %v915 = vshll.u32 2131351028, %v906
      %v916 = vshrl.u32 2102212464, %v907
      %v917 = vor.u32 %v915, %v916
      %v918 = vshll.u32 2102212464, %v906
      %v919 = vshrl.u32 920167782, %v907
      %v920 = vor.u32 %v918, %v919
      %v921 = vshll.u32 920167782, %v906
      %v922 = vshrl.u32 1326507024, %v907
      %v923 = vor.u32 %v921, %v922
      %vm924 = vcmp.lt.s32.totalorder %v905, 1
      %vm925 = vcmp.lt.s32.totalorder %v905, 2
      %vm926 = vcmp.lt.s32.totalorder %v905, 3
      %vm927 = vcmp.lt.s32.totalorder %v905, 4
      %v928 = vsel %vm924, %v908, %v911
      %v929 = vsel %vm927, %v917, 2102212464
      %v930 = vsel %vm926, %v914, %v929
      %v931 = vsel %vm925, %v928, %v930
      %v932 = vsel %vm924, %v911, %v914
      %v933 = vsel %vm927, %v920, 920167782
      %v934 = vsel %vm926, %v917, %v933
      %v935 = vsel %vm925, %v932, %v934
      %v936 = vsel %vm924, %v914, %v917
      %v937 = vsel %vm927, %v923, 1326507024
      %v938 = vsel %vm926, %v920, %v937
      %v939 = vsel %vm925, %v936, %v938
      %v940 = vshll.u32 %v900, 8
      %v941 = vmul.u32.u64.compose %v940, %v939
      %v942 = vextract.low.u32 %v941
      %v943 = vextract.high.u32 %v941
      %v944 = vmul.u32.u64.compose %v940, %v935
      %v945 = vextract.low.u32 %v944
      %v946 = vextract.high.u32 %v944
      %v947 = vmul.u32 %v940, %v931
      %v948 = vadd.s32 %v943, %v945
      %vm949 = vc.u32 %v943, %v945
      %v950 = vadd.s32 %v946, 1
      %v951 = vsel %vm949, %v950, %v946
      %v952 = vadd.s32 %v947, %v951
      %v953 = vadd.s32 %v952, 536870912
      %v954 = vshrl.u32 %v953, 30
      %v955 = vshll.u32 %v954, 30
      %v956 = vsub.s32 %v952, %v955
      %vm957 = vcmp.lt.s32.totalorder %v956, 0
      %v958 = vsub.s32 0, %v956
      %v959 = vsel %vm957, %v958, %v956
      %v960 = vclz %v959
      %v961 = vsub.s32 %v960, 2
      %vm962 = vcmp.gt.s32.totalorder 0, %v961
      %v963 = vsel %vm962, 0, %v961
      %v964 = vsub.s32 32, %v963
      %v965 = vshll.u32 %v956, %v963
      %v966 = vshrl.u32 %v948, %v964
      %v967 = vor.u32 %v965, %v966
      %v968 = vsub.s32 4294967266, %v963
      %v969 = vadd.s32 %v968, 127
      %v970 = vshll.u32 %v969, 23
      %v971 = vor.u32 4788187, %v970
      %v972 = vand.u32 2147483647, %v971
      %v974 = vcvt.s32.f32 %v967
      %v975 = vmul.f32 %v974, %v972
      %v976 = vxor.u32 %v975, 2147483648
      %v977 = vsel %vm894, %v976, %v975
      %v978 = vsub.s32 4, %v954
      %v979 = vsel %vm894, %v978, %v954
      %v980 = vsel %vm893, %v261, %v977
      %v981 = vsel %vm893, 0, %v979
      %v982 = vcosq.f32.pop %v980
      %v983 = vsinq.f32.pop %v980
      %vm984 = vweird.f32 %v261
      %v985 = vadd.s32 %v981, 3
      %v986 = vand.u32 %v985, 3
      %vm987 = vcmp.lt.s32.totalorder %v986, 2
      %vm988 = vcmp.eq.s32.totalorder %v986, 0
      %v989 = vxor.u32 %v983, 2147483648
      %v990 = vsel %vm988, %v982, %v989
      %vm991 = vcmp.eq.s32.totalorder %v986, 2
      %v992 = vxor.u32 %v982, 2147483648
      %v993 = vsel %vm991, %v992, %v983
      %v994 = vsel %vm987, %v990, %v993
      %v995 = vsel %vm984, nan, %v994
      %v996 = vand.u32 2147483647, %v262
      %vm997 = vcmp.le.f32.partialorder %v996, 0.7853982
      %vm998 = vcmp.lt.s32.totalorder %v262, 0
      %v999 = vand.u32 %v262, 2139095040
      %v1000 = vshrl.u32 %v999, 23
      %v1001 = vsub.s32 %v1000, 127
      %v1002 = vand.u32 2147483647, %v262
      %v1003 = vand.u32 %v1002, 8388607
      %v1004 = vor.u32 %v1003, 8388608
      %v1005 = vsub.s32 0, %v1004
      %v1006 = vadd.s32 %v1001, 1
      %vm1007 = vcmp.gt.s32.totalorder %v1006, 0
      %v1008 = vsel %vm1007, %v1006, 0
      %v1009 = vshrl.u32 %v1008, 5
      %v1010 = vand.u32 %v1008, 31
      %v1011 = vsub.s32 32, %v1010
      %v1012 = vshrl.u32 683565275, %v1011
      %v1013 = vshll.u32 683565275, %v1010
      %v1014 = vshrl.u32 2475754826, %v1011
      %v1015 = vor.u32 %v1013, %v1014
      %v1016 = vshll.u32 2475754826, %v1010
      %v1017 = vshrl.u32 2131351028, %v1011
      %v1018 = vor.u32 %v1016, %v1017
      %v1019 = vshll.u32 2131351028, %v1010
      %v1020 = vshrl.u32 2102212464, %v1011
      %v1021 = vor.u32 %v1019, %v1020
      %v1022 = vshll.u32 2102212464, %v1010
      %v1023 = vshrl.u32 920167782, %v1011
      %v1024 = vor.u32 %v1022, %v1023
      %v1025 = vshll.u32 920167782, %v1010
      %v1026 = vshrl.u32 1326507024, %v1011
      %v1027 = vor.u32 %v1025, %v1026
      %vm1028 = vcmp.lt.s32.totalorder %v1009, 1
      %vm1029 = vcmp.lt.s32.totalorder %v1009, 2
      %vm1030 = vcmp.lt.s32.totalorder %v1009, 3
      %vm1031 = vcmp.lt.s32.totalorder %v1009, 4
      %v1032 = vsel %vm1028, %v1012, %v1015
      %v1033 = vsel %vm1031, %v1021, 2102212464
      %v1034 = vsel %vm1030, %v1018, %v1033
      %v1035 = vsel %vm1029, %v1032, %v1034
      %v1036 = vsel %vm1028, %v1015, %v1018
      %v1037 = vsel %vm1031, %v1024, 920167782
      %v1038 = vsel %vm1030, %v1021, %v1037
      %v1039 = vsel %vm1029, %v1036, %v1038
      %v1040 = vsel %vm1028, %v1018, %v1021
      %v1041 = vsel %vm1031, %v1027, 1326507024
      %v1042 = vsel %vm1030, %v1024, %v1041
      %v1043 = vsel %vm1029, %v1040, %v1042
      %v1044 = vshll.u32 %v1004, 8
      %v1045 = vmul.u32.u64.compose %v1044, %v1043
      %v1046 = vextract.low.u32 %v1045
      %v1047 = vextract.high.u32 %v1045
      %v1048 = vmul.u32.u64.compose %v1044, %v1039
      %v1049 = vextract.low.u32 %v1048
      %v1050 = vextract.high.u32 %v1048
      %v1051 = vmul.u32 %v1044, %v1035
      %v1052 = vadd.s32 %v1047, %v1049
      %vm1053 = vc.u32 %v1047, %v1049
      %v1054 = vadd.s32 %v1050, 1
      %v1055 = vsel %vm1053, %v1054, %v1050
      %v1056 = vadd.s32 %v1051, %v1055
      %v1057 = vadd.s32 %v1056, 536870912
      %v1058 = vshrl.u32 %v1057, 30
      %v1059 = vshll.u32 %v1058, 30
      %v1060 = vsub.s32 %v1056, %v1059
      %vm1061 = vcmp.lt.s32.totalorder %v1060, 0
      %v1062 = vsub.s32 0, %v1060
      %v1063 = vsel %vm1061, %v1062, %v1060
      %v1064 = vclz %v1063
      %v1065 = vsub.s32 %v1064, 2
      %vm1066 = vcmp.gt.s32.totalorder 0, %v1065
      %v1067 = vsel %vm1066, 0, %v1065
      %v1068 = vsub.s32 32, %v1067
      %v1069 = vshll.u32 %v1060, %v1067
      %v1070 = vshrl.u32 %v1052, %v1068
      %v1071 = vor.u32 %v1069, %v1070
      %v1072 = vsub.s32 4294967266, %v1067
      %v1073 = vadd.s32 %v1072, 127
      %v1074 = vshll.u32 %v1073, 23
      %v1075 = vor.u32 4788187, %v1074
      %v1076 = vand.u32 2147483647, %v1075
      %v1078 = vcvt.s32.f32 %v1071
      %v1079 = vmul.f32 %v1078, %v1076
      %v1080 = vxor.u32 %v1079, 2147483648
      %v1081 = vsel %vm998, %v1080, %v1079
      %v1082 = vsub.s32 4, %v1058
      %v1083 = vsel %vm998, %v1082, %v1058
      %v1084 = vsel %vm997, %v262, %v1081
      %v1085 = vsel %vm997, 0, %v1083
      %v1086 = vcosq.f32.pop %v1084
      %v1087 = vsinq.f32.pop %v1084
      %vm1088 = vweird.f32 %v262
      %v1089 = vadd.s32 %v1085, 3
      %v1090 = vand.u32 %v1089, 3
      %vm1091 = vcmp.lt.s32.totalorder %v1090, 2
      %vm1092 = vcmp.eq.s32.totalorder %v1090, 0
      %v1093 = vxor.u32 %v1087, 2147483648
      %v1094 = vsel %vm1092, %v1086, %v1093
      %vm1095 = vcmp.eq.s32.totalorder %v1090, 2
      %v1096 = vxor.u32 %v1086, 2147483648
      %v1097 = vsel %vm1095, %v1096, %v1087
      %v1098 = vsel %vm1091, %v1094, %v1097
      %v1099 = vsel %vm1088, nan, %v1098
      %v1100 = vand.u32 2147483647, %v263
      %vm1101 = vcmp.le.f32.partialorder %v1100, 0.7853982
      %vm1102 = vcmp.lt.s32.totalorder %v263, 0
      %v1103 = vand.u32 %v263, 2139095040
      %v1104 = vshrl.u32 %v1103, 23
      %v1105 = vsub.s32 %v1104, 127
      %v1106 = vand.u32 2147483647, %v263
      %v1107 = vand.u32 %v1106, 8388607
      %v1108 = vor.u32 %v1107, 8388608
      %v1109 = vsub.s32 0, %v1108
      %v1110 = vadd.s32 %v1105, 1
      %vm1111 = vcmp.gt.s32.totalorder %v1110, 0
      %v1112 = vsel %vm1111, %v1110, 0
      %v1113 = vshrl.u32 %v1112, 5
      %v1114 = vand.u32 %v1112, 31
      %v1115 = vsub.s32 32, %v1114
      %v1116 = vshrl.u32 683565275, %v1115
      %v1117 = vshll.u32 683565275, %v1114
      %v1118 = vshrl.u32 2475754826, %v1115
      %v1119 = vor.u32 %v1117, %v1118
      %v1120 = vshll.u32 2475754826, %v1114
      %v1121 = vshrl.u32 2131351028, %v1115
      %v1122 = vor.u32 %v1120, %v1121
      %v1123 = vshll.u32 2131351028, %v1114
      %v1124 = vshrl.u32 2102212464, %v1115
      %v1125 = vor.u32 %v1123, %v1124
      %v1126 = vshll.u32 2102212464, %v1114
      %v1127 = vshrl.u32 920167782, %v1115
      %v1128 = vor.u32 %v1126, %v1127
      %v1129 = vshll.u32 920167782, %v1114
      %v1130 = vshrl.u32 1326507024, %v1115
      %v1131 = vor.u32 %v1129, %v1130
      %vm1132 = vcmp.lt.s32.totalorder %v1113, 1
      %vm1133 = vcmp.lt.s32.totalorder %v1113, 2
      %vm1134 = vcmp.lt.s32.totalorder %v1113, 3
      %vm1135 = vcmp.lt.s32.totalorder %v1113, 4
      %v1136 = vsel %vm1132, %v1116, %v1119
      %v1137 = vsel %vm1135, %v1125, 2102212464
      %v1138 = vsel %vm1134, %v1122, %v1137
      %v1139 = vsel %vm1133, %v1136, %v1138
      %v1140 = vsel %vm1132, %v1119, %v1122
      %v1141 = vsel %vm1135, %v1128, 920167782
      %v1142 = vsel %vm1134, %v1125, %v1141
      %v1143 = vsel %vm1133, %v1140, %v1142
      %v1144 = vsel %vm1132, %v1122, %v1125
      %v1145 = vsel %vm1135, %v1131, 1326507024
      %v1146 = vsel %vm1134, %v1128, %v1145
      %v1147 = vsel %vm1133, %v1144, %v1146
      %v1148 = vshll.u32 %v1108, 8
      %v1149 = vmul.u32.u64.compose %v1148, %v1147
      %v1150 = vextract.low.u32 %v1149
      %v1151 = vextract.high.u32 %v1149
      %v1152 = vmul.u32.u64.compose %v1148, %v1143
      %v1153 = vextract.low.u32 %v1152
      %v1154 = vextract.high.u32 %v1152
      %v1155 = vmul.u32 %v1148, %v1139
      %v1156 = vadd.s32 %v1151, %v1153
      %vm1157 = vc.u32 %v1151, %v1153
      %v1158 = vadd.s32 %v1154, 1
      %v1159 = vsel %vm1157, %v1158, %v1154
      %v1160 = vadd.s32 %v1155, %v1159
      %v1161 = vadd.s32 %v1160, 536870912
      %v1162 = vshrl.u32 %v1161, 30
      %v1163 = vshll.u32 %v1162, 30
      %v1164 = vsub.s32 %v1160, %v1163
      %vm1165 = vcmp.lt.s32.totalorder %v1164, 0
      %v1166 = vsub.s32 0, %v1164
      %v1167 = vsel %vm1165, %v1166, %v1164
      %v1168 = vclz %v1167
      %v1169 = vsub.s32 %v1168, 2
      %vm1170 = vcmp.gt.s32.totalorder 0, %v1169
      %v1171 = vsel %vm1170, 0, %v1169
      %v1172 = vsub.s32 32, %v1171
      %v1173 = vshll.u32 %v1164, %v1171
      %v1174 = vshrl.u32 %v1156, %v1172
      %v1175 = vor.u32 %v1173, %v1174
      %v1176 = vsub.s32 4294967266, %v1171
      %v1177 = vadd.s32 %v1176, 127
      %v1178 = vshll.u32 %v1177, 23
      %v1179 = vor.u32 4788187, %v1178
      %v1180 = vand.u32 2147483647, %v1179
      %v1182 = vcvt.s32.f32 %v1175
      %v1183 = vmul.f32 %v1182, %v1180
      %v1184 = vxor.u32 %v1183, 2147483648
      %v1185 = vsel %vm1102, %v1184, %v1183
      %v1186 = vsub.s32 4, %v1162
      %v1187 = vsel %vm1102, %v1186, %v1162
      %v1188 = vsel %vm1101, %v263, %v1185
      %v1189 = vsel %vm1101, 0, %v1187
      %v1190 = vcosq.f32.pop %v1188
      %v1191 = vsinq.f32.pop %v1188
      %vm1192 = vweird.f32 %v263
      %v1193 = vadd.s32 %v1189, 3
      %v1194 = vand.u32 %v1193, 3
      %vm1195 = vcmp.lt.s32.totalorder %v1194, 2
      %vm1196 = vcmp.eq.s32.totalorder %v1194, 0
      %v1197 = vxor.u32 %v1191, 2147483648
      %v1198 = vsel %vm1196, %v1190, %v1197
      %vm1199 = vcmp.eq.s32.totalorder %v1194, 2
      %v1200 = vxor.u32 %v1190, 2147483648
      %v1201 = vsel %vm1199, %v1200, %v1191
      %v1202 = vsel %vm1195, %v1198, %v1201
      %v1203 = vsel %vm1192, nan, %v1202
      %v1204 = vand.u32 2147483647, %v264
      %vm1205 = vcmp.le.f32.partialorder %v1204, 0.7853982
      %vm1206 = vcmp.lt.s32.totalorder %v264, 0
      %v1207 = vand.u32 %v264, 2139095040
      %v1208 = vshrl.u32 %v1207, 23
      %v1209 = vsub.s32 %v1208, 127
      %v1210 = vand.u32 2147483647, %v264
      %v1211 = vand.u32 %v1210, 8388607
      %v1212 = vor.u32 %v1211, 8388608
      %v1213 = vsub.s32 0, %v1212
      %v1214 = vadd.s32 %v1209, 1
      %vm1215 = vcmp.gt.s32.totalorder %v1214, 0
      %v1216 = vsel %vm1215, %v1214, 0
      %v1217 = vshrl.u32 %v1216, 5
      %v1218 = vand.u32 %v1216, 31
      %v1219 = vsub.s32 32, %v1218
      %v1220 = vshrl.u32 683565275, %v1219
      %v1221 = vshll.u32 683565275, %v1218
      %v1222 = vshrl.u32 2475754826, %v1219
      %v1223 = vor.u32 %v1221, %v1222
      %v1224 = vshll.u32 2475754826, %v1218
      %v1225 = vshrl.u32 2131351028, %v1219
      %v1226 = vor.u32 %v1224, %v1225
      %v1227 = vshll.u32 2131351028, %v1218
      %v1228 = vshrl.u32 2102212464, %v1219
      %v1229 = vor.u32 %v1227, %v1228
      %v1230 = vshll.u32 2102212464, %v1218
      %v1231 = vshrl.u32 920167782, %v1219
      %v1232 = vor.u32 %v1230, %v1231
      %v1233 = vshll.u32 920167782, %v1218
      %v1234 = vshrl.u32 1326507024, %v1219
      %v1235 = vor.u32 %v1233, %v1234
      %vm1236 = vcmp.lt.s32.totalorder %v1217, 1
      %vm1237 = vcmp.lt.s32.totalorder %v1217, 2
      %vm1238 = vcmp.lt.s32.totalorder %v1217, 3
      %vm1239 = vcmp.lt.s32.totalorder %v1217, 4
      %v1240 = vsel %vm1236, %v1220, %v1223
      %v1241 = vsel %vm1239, %v1229, 2102212464
      %v1242 = vsel %vm1238, %v1226, %v1241
      %v1243 = vsel %vm1237, %v1240, %v1242
      %v1244 = vsel %vm1236, %v1223, %v1226
      %v1245 = vsel %vm1239, %v1232, 920167782
      %v1246 = vsel %vm1238, %v1229, %v1245
      %v1247 = vsel %vm1237, %v1244, %v1246
      %v1248 = vsel %vm1236, %v1226, %v1229
      %v1249 = vsel %vm1239, %v1235, 1326507024
      %v1250 = vsel %vm1238, %v1232, %v1249
      %v1251 = vsel %vm1237, %v1248, %v1250
      %v1252 = vshll.u32 %v1212, 8
      %v1253 = vmul.u32.u64.compose %v1252, %v1251
      %v1254 = vextract.low.u32 %v1253
      %v1255 = vextract.high.u32 %v1253
      %v1256 = vmul.u32.u64.compose %v1252, %v1247
      %v1257 = vextract.low.u32 %v1256
      %v1258 = vextract.high.u32 %v1256
      %v1259 = vmul.u32 %v1252, %v1243
      %v1260 = vadd.s32 %v1255, %v1257
      %vm1261 = vc.u32 %v1255, %v1257
      %v1262 = vadd.s32 %v1258, 1
      %v1263 = vsel %vm1261, %v1262, %v1258
      %v1264 = vadd.s32 %v1259, %v1263
      %v1265 = vadd.s32 %v1264, 536870912
      %v1266 = vshrl.u32 %v1265, 30
      %v1267 = vshll.u32 %v1266, 30
      %v1268 = vsub.s32 %v1264, %v1267
      %vm1269 = vcmp.lt.s32.totalorder %v1268, 0
      %v1270 = vsub.s32 0, %v1268
      %v1271 = vsel %vm1269, %v1270, %v1268
      %v1272 = vclz %v1271
      %v1273 = vsub.s32 %v1272, 2
      %vm1274 = vcmp.gt.s32.totalorder 0, %v1273
      %v1275 = vsel %vm1274, 0, %v1273
      %v1276 = vsub.s32 32, %v1275
      %v1277 = vshll.u32 %v1268, %v1275
      %v1278 = vshrl.u32 %v1260, %v1276
      %v1279 = vor.u32 %v1277, %v1278
      %v1280 = vsub.s32 4294967266, %v1275
      %v1281 = vadd.s32 %v1280, 127
      %v1282 = vshll.u32 %v1281, 23
      %v1283 = vor.u32 4788187, %v1282
      %v1284 = vand.u32 2147483647, %v1283
      %v1286 = vcvt.s32.f32 %v1279
      %v1287 = vmul.f32 %v1286, %v1284
      %v1288 = vxor.u32 %v1287, 2147483648
      %v1289 = vsel %vm1206, %v1288, %v1287
      %v1290 = vsub.s32 4, %v1266
      %v1291 = vsel %vm1206, %v1290, %v1266
      %v1292 = vsel %vm1205, %v264, %v1289
      %v1293 = vsel %vm1205, 0, %v1291
      %v1294 = vcosq.f32.pop %v1292
      %v1295 = vsinq.f32.pop %v1292
      %vm1296 = vweird.f32 %v264
      %v1297 = vadd.s32 %v1293, 3
      %v1298 = vand.u32 %v1297, 3
      %vm1299 = vcmp.lt.s32.totalorder %v1298, 2
      %vm1300 = vcmp.eq.s32.totalorder %v1298, 0
      %v1301 = vxor.u32 %v1295, 2147483648
      %v1302 = vsel %vm1300, %v1294, %v1301
      %vm1303 = vcmp.eq.s32.totalorder %v1298, 2
      %v1304 = vxor.u32 %v1294, 2147483648
      %v1305 = vsel %vm1303, %v1304, %v1295
      %v1306 = vsel %vm1299, %v1302, %v1305
      %v1307 = vsel %vm1296, nan, %v1306
      %v1308 = vand.u32 2147483647, %v265
      %vm1309 = vcmp.le.f32.partialorder %v1308, 0.7853982
      %vm1310 = vcmp.lt.s32.totalorder %v265, 0
      %v1311 = vand.u32 %v265, 2139095040
      %v1312 = vshrl.u32 %v1311, 23
      %v1313 = vsub.s32 %v1312, 127
      %v1314 = vand.u32 2147483647, %v265
      %v1315 = vand.u32 %v1314, 8388607
      %v1316 = vor.u32 %v1315, 8388608
      %v1317 = vsub.s32 0, %v1316
      %v1318 = vadd.s32 %v1313, 1
      %vm1319 = vcmp.gt.s32.totalorder %v1318, 0
      %v1320 = vsel %vm1319, %v1318, 0
      %v1321 = vshrl.u32 %v1320, 5
      %v1322 = vand.u32 %v1320, 31
      %v1323 = vsub.s32 32, %v1322
      %v1324 = vshrl.u32 683565275, %v1323
      %v1325 = vshll.u32 683565275, %v1322
      %v1326 = vshrl.u32 2475754826, %v1323
      %v1327 = vor.u32 %v1325, %v1326
      %v1328 = vshll.u32 2475754826, %v1322
      %v1329 = vshrl.u32 2131351028, %v1323
      %v1330 = vor.u32 %v1328, %v1329
      %v1331 = vshll.u32 2131351028, %v1322
      %v1332 = vshrl.u32 2102212464, %v1323
      %v1333 = vor.u32 %v1331, %v1332
      %v1334 = vshll.u32 2102212464, %v1322
      %v1335 = vshrl.u32 920167782, %v1323
      %v1336 = vor.u32 %v1334, %v1335
      %v1337 = vshll.u32 920167782, %v1322
      %v1338 = vshrl.u32 1326507024, %v1323
      %v1339 = vor.u32 %v1337, %v1338
      %vm1340 = vcmp.lt.s32.totalorder %v1321, 1
      %vm1341 = vcmp.lt.s32.totalorder %v1321, 2
      %vm1342 = vcmp.lt.s32.totalorder %v1321, 3
      %vm1343 = vcmp.lt.s32.totalorder %v1321, 4
      %v1344 = vsel %vm1340, %v1324, %v1327
      %v1345 = vsel %vm1343, %v1333, 2102212464
      %v1346 = vsel %vm1342, %v1330, %v1345
      %v1347 = vsel %vm1341, %v1344, %v1346
      %v1348 = vsel %vm1340, %v1327, %v1330
      %v1349 = vsel %vm1343, %v1336, 920167782
      %v1350 = vsel %vm1342, %v1333, %v1349
      %v1351 = vsel %vm1341, %v1348, %v1350
      %v1352 = vsel %vm1340, %v1330, %v1333
      %v1353 = vsel %vm1343, %v1339, 1326507024
      %v1354 = vsel %vm1342, %v1336, %v1353
      %v1355 = vsel %vm1341, %v1352, %v1354
      %v1356 = vshll.u32 %v1316, 8
      %v1357 = vmul.u32.u64.compose %v1356, %v1355
      %v1358 = vextract.low.u32 %v1357
      %v1359 = vextract.high.u32 %v1357
      %v1360 = vmul.u32.u64.compose %v1356, %v1351
      %v1361 = vextract.low.u32 %v1360
      %v1362 = vextract.high.u32 %v1360
      %v1363 = vmul.u32 %v1356, %v1347
      %v1364 = vadd.s32 %v1359, %v1361
      %vm1365 = vc.u32 %v1359, %v1361
      %v1366 = vadd.s32 %v1362, 1
      %v1367 = vsel %vm1365, %v1366, %v1362
      %v1368 = vadd.s32 %v1363, %v1367
      %v1369 = vadd.s32 %v1368, 536870912
      %v1370 = vshrl.u32 %v1369, 30
      %v1371 = vshll.u32 %v1370, 30
      %v1372 = vsub.s32 %v1368, %v1371
      %vm1373 = vcmp.lt.s32.totalorder %v1372, 0
      %v1374 = vsub.s32 0, %v1372
      %v1375 = vsel %vm1373, %v1374, %v1372
      %v1376 = vclz %v1375
      %v1377 = vsub.s32 %v1376, 2
      %vm1378 = vcmp.gt.s32.totalorder 0, %v1377
      %v1379 = vsel %vm1378, 0, %v1377
      %v1380 = vsub.s32 32, %v1379
      %v1381 = vshll.u32 %v1372, %v1379
      %v1382 = vshrl.u32 %v1364, %v1380
      %v1383 = vor.u32 %v1381, %v1382
      %v1384 = vsub.s32 4294967266, %v1379
      %v1385 = vadd.s32 %v1384, 127
      %v1386 = vshll.u32 %v1385, 23
      %v1387 = vor.u32 4788187, %v1386
      %v1388 = vand.u32 2147483647, %v1387
      %v1390 = vcvt.s32.f32 %v1383
      %v1391 = vmul.f32 %v1390, %v1388
      %v1392 = vxor.u32 %v1391, 2147483648
      %v1393 = vsel %vm1310, %v1392, %v1391
      %v1394 = vsub.s32 4, %v1370
      %v1395 = vsel %vm1310, %v1394, %v1370
      %v1396 = vsel %vm1309, %v265, %v1393
      %v1397 = vsel %vm1309, 0, %v1395
      %v1398 = vcosq.f32.pop %v1396
      %v1399 = vsinq.f32.pop %v1396
      %vm1400 = vweird.f32 %v265
      %v1401 = vadd.s32 %v1397, 3
      %v1402 = vand.u32 %v1401, 3
      %vm1403 = vcmp.lt.s32.totalorder %v1402, 2
      %vm1404 = vcmp.eq.s32.totalorder %v1402, 0
      %v1405 = vxor.u32 %v1399, 2147483648
      %v1406 = vsel %vm1404, %v1398, %v1405
      %vm1407 = vcmp.eq.s32.totalorder %v1402, 2
      %v1408 = vxor.u32 %v1398, 2147483648
      %v1409 = vsel %vm1407, %v1408, %v1399
      %v1410 = vsel %vm1403, %v1406, %v1409
      %v1411 = vsel %vm1400, nan, %v1410
      %v1412 = vand.u32 2147483647, %v266
      %vm1413 = vcmp.le.f32.partialorder %v1412, 0.7853982
      %vm1414 = vcmp.lt.s32.totalorder %v266, 0
      %v1415 = vand.u32 %v266, 2139095040
      %v1416 = vshrl.u32 %v1415, 23
      %v1417 = vsub.s32 %v1416, 127
      %v1418 = vand.u32 2147483647, %v266
      %v1419 = vand.u32 %v1418, 8388607
      %v1420 = vor.u32 %v1419, 8388608
      %v1421 = vsub.s32 0, %v1420
      %v1422 = vadd.s32 %v1417, 1
      %vm1423 = vcmp.gt.s32.totalorder %v1422, 0
      %v1424 = vsel %vm1423, %v1422, 0
      %v1425 = vshrl.u32 %v1424, 5
      %v1426 = vand.u32 %v1424, 31
      %v1427 = vsub.s32 32, %v1426
      %v1428 = vshrl.u32 683565275, %v1427
      %v1429 = vshll.u32 683565275, %v1426
      %v1430 = vshrl.u32 2475754826, %v1427
      %v1431 = vor.u32 %v1429, %v1430
      %v1432 = vshll.u32 2475754826, %v1426
      %v1433 = vshrl.u32 2131351028, %v1427
      %v1434 = vor.u32 %v1432, %v1433
      %v1435 = vshll.u32 2131351028, %v1426
      %v1436 = vshrl.u32 2102212464, %v1427
      %v1437 = vor.u32 %v1435, %v1436
      %v1438 = vshll.u32 2102212464, %v1426
      %v1439 = vshrl.u32 920167782, %v1427
      %v1440 = vor.u32 %v1438, %v1439
      %v1441 = vshll.u32 920167782, %v1426
      %v1442 = vshrl.u32 1326507024, %v1427
      %v1443 = vor.u32 %v1441, %v1442
      %vm1444 = vcmp.lt.s32.totalorder %v1425, 1
      %vm1445 = vcmp.lt.s32.totalorder %v1425, 2
      %vm1446 = vcmp.lt.s32.totalorder %v1425, 3
      %vm1447 = vcmp.lt.s32.totalorder %v1425, 4
      %v1448 = vsel %vm1444, %v1428, %v1431
      %v1449 = vsel %vm1447, %v1437, 2102212464
      %v1450 = vsel %vm1446, %v1434, %v1449
      %v1451 = vsel %vm1445, %v1448, %v1450
      %v1452 = vsel %vm1444, %v1431, %v1434
      %v1453 = vsel %vm1447, %v1440, 920167782
      %v1454 = vsel %vm1446, %v1437, %v1453
      %v1455 = vsel %vm1445, %v1452, %v1454
      %v1456 = vsel %vm1444, %v1434, %v1437
      %v1457 = vsel %vm1447, %v1443, 1326507024
      %v1458 = vsel %vm1446, %v1440, %v1457
      %v1459 = vsel %vm1445, %v1456, %v1458
      %v1460 = vshll.u32 %v1420, 8
      %v1461 = vmul.u32.u64.compose %v1460, %v1459
      %v1462 = vextract.low.u32 %v1461
      %v1463 = vextract.high.u32 %v1461
      %v1464 = vmul.u32.u64.compose %v1460, %v1455
      %v1465 = vextract.low.u32 %v1464
      %v1466 = vextract.high.u32 %v1464
      %v1467 = vmul.u32 %v1460, %v1451
      %v1468 = vadd.s32 %v1463, %v1465
      %vm1469 = vc.u32 %v1463, %v1465
      %v1470 = vadd.s32 %v1466, 1
      %v1471 = vsel %vm1469, %v1470, %v1466
      %v1472 = vadd.s32 %v1467, %v1471
      %v1473 = vadd.s32 %v1472, 536870912
      %v1474 = vshrl.u32 %v1473, 30
      %v1475 = vshll.u32 %v1474, 30
      %v1476 = vsub.s32 %v1472, %v1475
      %vm1477 = vcmp.lt.s32.totalorder %v1476, 0
      %v1478 = vsub.s32 0, %v1476
      %v1479 = vsel %vm1477, %v1478, %v1476
      %v1480 = vclz %v1479
      %v1481 = vsub.s32 %v1480, 2
      %vm1482 = vcmp.gt.s32.totalorder 0, %v1481
      %v1483 = vsel %vm1482, 0, %v1481
      %v1484 = vsub.s32 32, %v1483
      %v1485 = vshll.u32 %v1476, %v1483
      %v1486 = vshrl.u32 %v1468, %v1484
      %v1487 = vor.u32 %v1485, %v1486
      %v1488 = vsub.s32 4294967266, %v1483
      %v1489 = vadd.s32 %v1488, 127
      %v1490 = vshll.u32 %v1489, 23
      %v1491 = vor.u32 4788187, %v1490
      %v1492 = vand.u32 2147483647, %v1491
      %v1494 = vcvt.s32.f32 %v1487
      %v1495 = vmul.f32 %v1494, %v1492
      %v1496 = vxor.u32 %v1495, 2147483648
      %v1497 = vsel %vm1414, %v1496, %v1495
      %v1498 = vsub.s32 4, %v1474
      %v1499 = vsel %vm1414, %v1498, %v1474
      %v1500 = vsel %vm1413, %v266, %v1497
      %v1501 = vsel %vm1413, 0, %v1499
      %v1502 = vcosq.f32.pop %v1500
      %v1503 = vsinq.f32.pop %v1500
      %vm1504 = vweird.f32 %v266
      %v1505 = vadd.s32 %v1501, 3
      %v1506 = vand.u32 %v1505, 3
      %vm1507 = vcmp.lt.s32.totalorder %v1506, 2
      %vm1508 = vcmp.eq.s32.totalorder %v1506, 0
      %v1509 = vxor.u32 %v1503, 2147483648
      %v1510 = vsel %vm1508, %v1502, %v1509
      %vm1511 = vcmp.eq.s32.totalorder %v1506, 2
      %v1512 = vxor.u32 %v1502, 2147483648
      %v1513 = vsel %vm1511, %v1512, %v1503
      %v1514 = vsel %vm1507, %v1510, %v1513
      %v1515 = vsel %vm1504, nan, %v1514
      %v1516 = vand.u32 2147483647, %v267
      %vm1517 = vcmp.le.f32.partialorder %v1516, 0.7853982
      %vm1518 = vcmp.lt.s32.totalorder %v267, 0
      %v1519 = vand.u32 %v267, 2139095040
      %v1520 = vshrl.u32 %v1519, 23
      %v1521 = vsub.s32 %v1520, 127
      %v1522 = vand.u32 2147483647, %v267
      %v1523 = vand.u32 %v1522, 8388607
      %v1524 = vor.u32 %v1523, 8388608
      %v1525 = vsub.s32 0, %v1524
      %v1526 = vadd.s32 %v1521, 1
      %vm1527 = vcmp.gt.s32.totalorder %v1526, 0
      %v1528 = vsel %vm1527, %v1526, 0
      %v1529 = vshrl.u32 %v1528, 5
      %v1530 = vand.u32 %v1528, 31
      %v1531 = vsub.s32 32, %v1530
      %v1532 = vshrl.u32 683565275, %v1531
      %v1533 = vshll.u32 683565275, %v1530
      %v1534 = vshrl.u32 2475754826, %v1531
      %v1535 = vor.u32 %v1533, %v1534
      %v1536 = vshll.u32 2475754826, %v1530
      %v1537 = vshrl.u32 2131351028, %v1531
      %v1538 = vor.u32 %v1536, %v1537
      %v1539 = vshll.u32 2131351028, %v1530
      %v1540 = vshrl.u32 2102212464, %v1531
      %v1541 = vor.u32 %v1539, %v1540
      %v1542 = vshll.u32 2102212464, %v1530
      %v1543 = vshrl.u32 920167782, %v1531
      %v1544 = vor.u32 %v1542, %v1543
      %v1545 = vshll.u32 920167782, %v1530
      %v1546 = vshrl.u32 1326507024, %v1531
      %v1547 = vor.u32 %v1545, %v1546
      %vm1548 = vcmp.lt.s32.totalorder %v1529, 1
      %vm1549 = vcmp.lt.s32.totalorder %v1529, 2
      %vm1550 = vcmp.lt.s32.totalorder %v1529, 3
      %vm1551 = vcmp.lt.s32.totalorder %v1529, 4
      %v1552 = vsel %vm1548, %v1532, %v1535
      %v1553 = vsel %vm1551, %v1541, 2102212464
      %v1554 = vsel %vm1550, %v1538, %v1553
      %v1555 = vsel %vm1549, %v1552, %v1554
      %v1556 = vsel %vm1548, %v1535, %v1538
      %v1557 = vsel %vm1551, %v1544, 920167782
      %v1558 = vsel %vm1550, %v1541, %v1557
      %v1559 = vsel %vm1549, %v1556, %v1558
      %v1560 = vsel %vm1548, %v1538, %v1541
      %v1561 = vsel %vm1551, %v1547, 1326507024
      %v1562 = vsel %vm1550, %v1544, %v1561
      %v1563 = vsel %vm1549, %v1560, %v1562
      %v1564 = vshll.u32 %v1524, 8
      %v1565 = vmul.u32.u64.compose %v1564, %v1563
      %v1566 = vextract.low.u32 %v1565
      %v1567 = vextract.high.u32 %v1565
      %v1568 = vmul.u32.u64.compose %v1564, %v1559
      %v1569 = vextract.low.u32 %v1568
      %v1570 = vextract.high.u32 %v1568
      %v1571 = vmul.u32 %v1564, %v1555
      %v1572 = vadd.s32 %v1567, %v1569
      %vm1573 = vc.u32 %v1567, %v1569
      %v1574 = vadd.s32 %v1570, 1
      %v1575 = vsel %vm1573, %v1574, %v1570
      %v1576 = vadd.s32 %v1571, %v1575
      %v1577 = vadd.s32 %v1576, 536870912
      %v1578 = vshrl.u32 %v1577, 30
      %v1579 = vshll.u32 %v1578, 30
      %v1580 = vsub.s32 %v1576, %v1579
      %vm1581 = vcmp.lt.s32.totalorder %v1580, 0
      %v1582 = vsub.s32 0, %v1580
      %v1583 = vsel %vm1581, %v1582, %v1580
      %v1584 = vclz %v1583
      %v1585 = vsub.s32 %v1584, 2
      %vm1586 = vcmp.gt.s32.totalorder 0, %v1585
      %v1587 = vsel %vm1586, 0, %v1585
      %v1588 = vsub.s32 32, %v1587
      %v1589 = vshll.u32 %v1580, %v1587
      %v1590 = vshrl.u32 %v1572, %v1588
      %v1591 = vor.u32 %v1589, %v1590
      %v1592 = vsub.s32 4294967266, %v1587
      %v1593 = vadd.s32 %v1592, 127
      %v1594 = vshll.u32 %v1593, 23
      %v1595 = vor.u32 4788187, %v1594
      %v1596 = vand.u32 2147483647, %v1595
      %v1598 = vcvt.s32.f32 %v1591
      %v1599 = vmul.f32 %v1598, %v1596
      %v1600 = vxor.u32 %v1599, 2147483648
      %v1601 = vsel %vm1518, %v1600, %v1599
      %v1602 = vsub.s32 4, %v1578
      %v1603 = vsel %vm1518, %v1602, %v1578
      %v1604 = vsel %vm1517, %v267, %v1601
      %v1605 = vsel %vm1517, 0, %v1603
      %v1606 = vcosq.f32.pop %v1604
      %v1607 = vsinq.f32.pop %v1604
      %vm1608 = vweird.f32 %v267
      %v1609 = vadd.s32 %v1605, 3
      %v1610 = vand.u32 %v1609, 3
      %vm1611 = vcmp.lt.s32.totalorder %v1610, 2
      %vm1612 = vcmp.eq.s32.totalorder %v1610, 0
      %v1613 = vxor.u32 %v1607, 2147483648
      %v1614 = vsel %vm1612, %v1606, %v1613
      %vm1615 = vcmp.eq.s32.totalorder %v1610, 2
      %v1616 = vxor.u32 %v1606, 2147483648
      %v1617 = vsel %vm1615, %v1616, %v1607
      %v1618 = vsel %vm1611, %v1614, %v1617
      %v1619 = vsel %vm1608, nan, %v1618
      %1621 = vset.pattern.permute.xlu0 0
      %1622 = vperm.xlu0 %1621, %v177
      %v1623 = vpop.permute.xlu0 %1622
      %1626 = vset.pattern.permute.xlu0 0
      %1627 = vperm.xlu0 %1626, %v178
      %v1628 = vpop.permute.xlu0 %1627
      %1631 = vset.pattern.permute.xlu0 0
      %1632 = vperm.xlu0 %1631, %v179
      %v1633 = vpop.permute.xlu0 %1632
      %1636 = vset.pattern.permute.xlu0 0
      %1637 = vperm.xlu0 %1636, %v180
      %v1638 = vpop.permute.xlu0 %1637
      %1641 = vset.pattern.permute.xlu0 0
      %1642 = vperm.xlu0 %1641, %v181
      %v1643 = vpop.permute.xlu0 %1642
      %1646 = vset.pattern.permute.xlu0 0
      %1647 = vperm.xlu0 %1646, %v182
      %v1648 = vpop.permute.xlu0 %1647
      %1651 = vset.pattern.permute.xlu0 0
      %1652 = vperm.xlu0 %1651, %v183
      %v1653 = vpop.permute.xlu0 %1652
      %1656 = vset.pattern.permute.xlu0 0
      %1657 = vperm.xlu0 %1656, %v184
      %v1658 = vpop.permute.xlu0 %1657
      %1661 = vset.pattern.permute.xlu0 0
      %1662 = vperm.xlu0 %1661, %v185
      %v1663 = vpop.permute.xlu0 %1662
      %1666 = vset.pattern.permute.xlu0 0
      %1667 = vperm.xlu0 %1666, %v186
      %v1668 = vpop.permute.xlu0 %1667
      %1671 = vset.pattern.permute.xlu0 0
      %1672 = vperm.xlu0 %1671, %v187
      %v1673 = vpop.permute.xlu0 %1672
      %1676 = vset.pattern.permute.xlu0 0
      %1677 = vperm.xlu0 %1676, %v188
      %v1678 = vpop.permute.xlu0 %1677
      %1681 = vset.pattern.permute.xlu0 0
      %1682 = vperm.xlu0 %1681, %v189
      %v1683 = vpop.permute.xlu0 %1682
      %v1685 = vmul.f32 %v371, %v1623
      %v1686 = vmul.f32 %v475, %v1628
      %v1687 = vmul.f32 %v579, %v1633
      %v1688 = vmul.f32 %v683, %v1638
      %v1689 = vmul.f32 %v787, %v1643
      %v1690 = vmul.f32 %v891, %v1648
      %v1691 = vmul.f32 %v995, %v1653
      %v1692 = vmul.f32 %v1099, %v1658
      %v1693 = vmul.f32 %v1203, %v1663
      %v1694 = vmul.f32 %v1307, %v1668
      %v1695 = vmul.f32 %v1411, %v1673
      %v1696 = vmul.f32 %v1515, %v1678
      %v1697 = vmul.f32 %v1619, %v1683
      %vm1698 = vcmask 408576
      %1699 = vst.msk [vmem:[%s118] sm:$0xff] %vm1698, %v1685
      %1700 = vst.msk [vmem:[%s118 + $0x8] sm:$0xff] %vm1698, %v1686
      %1701 = vst.msk [vmem:[%s118 + $0x10] sm:$0xff] %vm1698, %v1687
      %1702 = vst.msk [vmem:[%s118 + $0x18] sm:$0xff] %vm1698, %v1688
      %1703 = vst.msk [vmem:[%s118 + $0x20] sm:$0xff] %vm1698, %v1689
      %1704 = vst.msk [vmem:[%s118 + $0x28] sm:$0xff] %vm1698, %v1690
      %1705 = vst.msk [vmem:[%s118 + $0x30] sm:$0xff] %vm1698, %v1691
      %1706 = vst.msk [vmem:[%s118 + $0x38] sm:$0xff] %vm1698, %v1692
      %1707 = vst.msk [vmem:[%s118 + $0x40] sm:$0xff] %vm1698, %v1693
      %1708 = vst.msk [vmem:[%s118 + $0x48] sm:$0xff] %vm1698, %v1694
      %1709 = vst.msk [vmem:[%s118 + $0x50] sm:$0xff] %vm1698, %v1695
      %1710 = vst.msk [vmem:[%s118 + $0x58] sm:$0xff] %vm1698, %v1696
      %1711 = vst.msk [vmem:[%s118 + $0x60] sm:$0xff] %vm1698, %v1697
      %s1712 = smul.u32 13, %s12
      %p1713 = scmp.lt.s32.totalorder %s1712, 25
      %s1714 = scalar_select %p1713, %s1712, 25
      %s1715 = smul.addr %s1714, 8
      %s1716 = scalar_lea.vmem %s1, %s1715
      // Predicated region
      $region25: #{tpu_custom_call.1} parent=23 // pred_check
        %p1717 = pneg %p56
      $region26: #{tpu_custom_call.1} parent=23 // pred_check_branch
        %1719 = sbr.rel (%p1717) target = $region28
      $region27: #{tpu_custom_call.1} parent=23 // pred_region
        %s1720 = smul.u32 13, %s12
      $region28: #{tpu_custom_call.1} parent=23 // pred_fallthru
        _
    $region24: #{tpu_custom_call.1} parent=5 // pred_fallthru
      _
    %p1721 = scmp.le.s32.totalorder 2, %s7
    // Predicated region
    $region29: #{tpu_custom_call.1} parent=5 // pred_check
      %p1722 = pneg %p1721
    $region30: #{tpu_custom_call.1} parent=5 // pred_check_branch
      %1724 = sbr.rel (%p1722) target = $region32
    $region31: #{tpu_custom_call.1} parent=5 // pred_region
      %s1725 = ssub.s32 %s7, 2
      // Predicated region
      $region33: #{tpu_custom_call.1} parent=31 // pred_check
        %p1726 = pneg %p62
      $region34: #{tpu_custom_call.1} parent=31 // pred_check_branch
        %1728 = sbr.rel (%p1726) target = $region36
      $region35: #{tpu_custom_call.1} parent=31 // pred_region
        %s1729 = smul.u32 13, %s13
        %p1730 = scmp.lt.s32.totalorder %s1729, 25
        %s1731 = scalar_select %p1730, %s1729, 25
        %s1732 = smul.addr %s1731, 8
        %s1733 = scalar_lea.vmem %s1, %s1732
      $region36: #{tpu_custom_call.1} parent=31 // pred_fallthru
        _
    $region32: #{tpu_custom_call.1} parent=5 // pred_fallthru
      _
  $region6: #{tpu_custom_call.1} parent=0 // loop_footer
    %s11 = sadd.s32 1, %s7
  $region7: #{tpu_custom_call.1} parent=0 // loop_footer_branch
    %6 = sbr.rel target = $region3
  $region8: #{tpu_custom_call.1} parent=0 // loop_exit
    _

</llo_original>
